<compile_context>
chip_gen: v6e
topology: v6e:2x2x1
jax: 0.10.0
libtpu: 0.0.40
codegen_flags: <defaults>
</compile_context>

<pallas_src>
import functools

import jax
import jax.numpy as jnp
import numpy as np
from jax import lax
from jax.experimental import pallas as pl
from jax.experimental.pallas import tpu as pltpu


def _cross_attn_kernel(x_ref, y_ref, wq_ref, wkv_ref, o_ref, k_cache, v_cache,
                       *, H, D, C, scale, compute_dtype):
    # x_ref:   (1, TQ, C)   query-token tile
    # y_ref:   (1, N2, Cy)  full context (resident across query tiles)
    # wq_ref:  (C, C)       fused q projection   (single-buffered)
    # wkv_ref: (Cy, 2C)     fused k|v projection (single-buffered)
    # o_ref:   (1, TQ, C)
    # k_cache / v_cache: (N2, C) VMEM scratch in compute dtype, filled once per
    #   (batch, outer) grid step and reused by every query tile of that batch.

    # ---- K/V projection: hoisted out of the query-tile loop ---------------
    @pl.when(pl.program_id(2) == 0)
    def _():
        yb = y_ref[0]                                              # (N2, Cy)
        kv = jnp.dot(yb, wkv_ref[...],
                     preferred_element_type=jnp.float32)           # (N2, 2C)
        k_cache[...] = kv[:, :C].astype(compute_dtype)
        v_cache[...] = kv[:, C:].astype(compute_dtype)

    # ---- Q projection: one full-width (TQ, C) x (C, C) MXU matmul ---------
    x = x_ref[0]                                                   # (TQ, C)
    q = jnp.dot(x, wq_ref[...], preferred_element_type=jnp.float32)
    q = (q * scale).astype(compute_dtype)                          # exact f32 scale

    # ---- per-head attention (static lane slices; free when D % 128 == 0) --
    outs = []
    for h in range(H):
        lo, hi = h * D, (h + 1) * D
        qh = q[:, lo:hi]                                           # (TQ, D)
        kh = k_cache[:, lo:hi]                                     # (N2, D)
        vh = v_cache[:, lo:hi]                                     # (N2, D)

        # Scores: contract D on both sides, f32 accumulation.
        s = lax.dot_general(qh, kh, dimension_numbers=(((1,), (1,)), ((), ())),
                            preferred_element_type=jnp.float32)    # (TQ, N2)

        # Softmax in f32; reciprocal goes to the (otherwise idle) EUP slot.
        # NOTE: approx=True has ~2^-12 relative error (fine for inference).
        s = s - jnp.max(s, axis=-1, keepdims=True)
        p = jnp.exp(s)
        p = p * pl.reciprocal(jnp.sum(p, axis=-1, keepdims=True), approx=True)

        oh = jnp.dot(p.astype(compute_dtype), vh,
                     preferred_element_type=jnp.float32)           # (TQ, D)
        outs.append(oh.astype(o_ref.dtype))    # cast early: bounds f32 live range

    # Single lane-dense (TQ, C) store.
    o_ref[0] = jnp.concatenate(outs, axis=-1)


def cross_attention_pallas(x, y, wq, wkv, num_heads, *, tq=None, q_par=None,
                           vmem_limit_bytes=None):
    B, N, C = x.shape
    _, N2, Cy = y.shape
    H = num_heads
    assert C % H == 0, "dim must be divisible by num_heads"
    D = C // H
    scale = float(D) ** -0.5
    compute_dtype = x.dtype
    esz = jnp.dtype(compute_dtype).itemsize
    f32 = 4

    # ---- chip-aware VMEM budget -------------------------------------------
    try:
        vmem_cap = int(pltpu.get_tpu_info().vmem_capacity_bytes)
    except Exception:
        vmem_cap = 64 * 2**20          # conservative fallback (v7x-sized)
    if vmem_limit_bytes is None:
        # ~54 MiB on 64 MiB parts (v7x), ~100 MiB on 128 MiB parts (v5e/v6e).
        cap = 54 * 2**20 if vmem_cap <= 64 * 2**20 else 100 * 2**20
        vmem_limit_bytes = min(cap, int(vmem_cap * 0.85))

    # ---- query-tile size: largest multiple-of-8 divisor of N that fits ----
    if tq is None:
        fixed = (esz * (C * C + Cy * 2 * C)     # wq + wkv, single-buffered
                 + 2 * esz * N2 * Cy            # y block (double-buffered)
                 + 2 * esz * N2 * C             # K/V VMEM caches
                 + f32 * N2 * 2 * C)            # transient f32 kv at cache fill
        budget = int(vmem_limit_bytes * 0.9) - fixed
        per_row = (4 * esz * C                  # x / out tiles, 2 buffers each
                   + f32 * C + esz * C          # f32 q + compute-dtype copy
                   + f32 * N2 + esz * N2        # f32 scores + compute-dtype probs
                   + f32 * C)                   # per-head f32 partial outputs
        tq = 8
        for cand in (512, 256, 128, 64, 32, 16, 8):
            if cand <= N and N % cand == 0 and cand * per_row <= budget:
                tq = cand
                break
        if N % tq != 0:
            tq = N                              # small / odd N: one full-query tile
    assert N % tq == 0, "query length must be divisible by the query tile"

    # ---- grid: batch (parallel) x query-outer (parallel) x query-inner ----
    if q_par is None:
        # Keep >= 2 parallel steps for the 2 TensorCores on v7x when B == 1.
        q_par = 2 if (B == 1 and (N // tq) % 2 == 0) else 1
    assert (N // tq) % q_par == 0
    n_i = N // (tq * q_par)

    # ---- trace-time weight prep (cast to compute dtype; k|v kept fused) ---
    wq_c = wq.astype(compute_dtype)             # (C, C)
    wkv_c = wkv.astype(compute_dtype)           # (Cy, 2C): [:, :C]->K, [:, C:]->V

    kernel = functools.partial(_cross_attn_kernel, H=H, D=D, C=C, scale=scale,
                               compute_dtype=compute_dtype)

    return pl.pallas_call(
        kernel,
        out_shape=jax.ShapeDtypeStruct((B, N, C), x.dtype),
        grid_spec=pltpu.PrefetchScalarGridSpec(
            num_scalar_prefetch=0,
            grid=(B, q_par, n_i),
            in_specs=[
                pl.BlockSpec((1, tq, C), lambda b, o, i: (b, o * n_i + i, 0)),   # x tile
                pl.BlockSpec((1, N2, Cy), lambda b, o, i: (b, 0, 0)),            # context
                pl.BlockSpec((C, C), lambda b, o, i: (0, 0),
                             pipeline_mode=pl.Buffered(1)),                      # wq (resident)
                pl.BlockSpec((Cy, 2 * C), lambda b, o, i: (0, 0),
                             pipeline_mode=pl.Buffered(1)),                      # wkv (resident)
            ],
            out_specs=pl.BlockSpec((1, tq, C), lambda b, o, i: (b, o * n_i + i, 0)),
            scratch_shapes=[pltpu.VMEM((N2, C), compute_dtype),                  # K cache
                            pltpu.VMEM((N2, C), compute_dtype)],                 # V cache
        ),
        compiler_params=pltpu.CompilerParams(
            dimension_semantics=("parallel", "parallel", "arbitrary"),
            vmem_limit_bytes=vmem_limit_bytes,
        ),
    )(x, y, wq_c, wkv_c)


def cross_attention_reference(x, y, wq, wkv, num_heads):
    B, N, C = x.shape
    N2 = y.shape[1]
    D = C // num_heads
    scale = float(D) ** -0.5

    q = x @ wq                            # (B, N, C)
    kv = y @ wkv                          # (B, N2, 2C)
    k, v = kv[..., :C], kv[..., C:]

    q = q.reshape(B, N, num_heads, D).transpose(0, 2, 1, 3) * scale
    k = k.reshape(B, N2, num_heads, D).transpose(0, 2, 1, 3)
    v = v.reshape(B, N2, num_heads, D).transpose(0, 2, 1, 3)

    attn = jax.nn.softmax(q @ k.transpose(0, 1, 3, 2), axis=-1)  # (B, H, N, N2)
    out = (attn @ v).transpose(0, 2, 1, 3).reshape(B, N, C)
    return out


if __name__ == "__main__":
    # Small shapes consistent with the module's forward.
    # NOTE: these toy sizes are far below the (8,128) vreg tile; tiling/tuning
    # conclusions must be validated on production shapes.
    B, N, N2 = 2, 16, 8
    dim, dim_y, num_heads = 32, 24, 8

    key = jax.random.PRNGKey(0)
    kx, ky, kwq, kwkv = jax.random.split(key, 4)

    x = jax.random.normal(kx, (B, N, dim), dtype=jnp.float32)
    y = jax.random.normal(ky, (B, N2, dim_y), dtype=jnp.float32)
    # Deterministic parameter init (stored (in, out), transpose of nn.Linear.weight).
    wq = jax.random.normal(kwq, (dim, dim), dtype=jnp.float32) * 0.05
    wkv = jax.random.normal(kwkv, (dim_y, 2 * dim), dtype=jnp.float32) * 0.05

    ref = cross_attention_reference(x, y, wq, wkv, num_heads)

    # Case 1: B=2, tq=8 -> two query tiles per batch; exercises the hoisted
    # K/V cache being reused across query tiles.
    out = cross_attention_pallas(x, y, wq, wkv, num_heads, tq=8)
    out = jax.block_until_ready(out)
    np.testing.assert_allclose(np.asarray(out), np.asarray(ref), rtol=2e-3, atol=2e-3)

    # Case 2: B=1 -> exercises the query-outer parallel split (q_par=2) that
    # keeps both v7x TensorCores busy when batch is tiny.
    out1 = cross_attention_pallas(x[:1], y[:1], wq, wkv, num_heads, tq=8)
    out1 = jax.block_until_ready(out1)
    np.testing.assert_allclose(np.asarray(out1), np.asarray(ref[:1]), rtol=2e-3, atol=2e-3)

    print("KERNEL_OK")
</pallas_src>

<mosaic_0001>
module attributes {stable_mosaic.version = 11 : i64} {
  func.func @_cross_attn_kernel(%arg0: i32, %arg1: i32, %arg2: i32, %arg3: memref<1x8x32xf32, #tpu.memory_space<vmem>>, %arg4: memref<1x8x24xf32, #tpu.memory_space<vmem>>, %arg5: memref<32x32xf32, #tpu.memory_space<vmem>>, %arg6: memref<24x64xf32, #tpu.memory_space<vmem>>, %arg7: memref<1x8x32xf32, #tpu.memory_space<vmem>>, %arg8: memref<8x32xf32, #tpu.memory_space<vmem>>, %arg9: memref<8x32xf32, #tpu.memory_space<vmem>>) attributes {dimension_semantics = [#tpu.dimension_semantics<parallel>, #tpu.dimension_semantics<parallel>, #tpu.dimension_semantics<arbitrary>], iteration_bounds = array<i64: 2, 1, 2>, scalar_prefetch = 0 : i64, scratch_operands = 2 : i64, tpu.core_type = #tpu.core_type<tc>, window_params = [{transform_indices = @transform_0, window_bounds = array<i64: 1, 8, 32>}, {transform_indices = @transform_1, window_bounds = array<i64: 1, 8, 24>}, {pipeline_mode = #tpu.pipeline_mode<synchronous>, transform_indices = @transform_2, window_bounds = array<i64: 32, 32>}, {pipeline_mode = #tpu.pipeline_mode<synchronous>, transform_indices = @transform_3, window_bounds = array<i64: 24, 64>}, {transform_indices = @transform_4, window_bounds = array<i64: 1, 8, 32>}]} {
    %c0_i32 = arith.constant 0 : i32
    %0 = arith.cmpi eq, %arg2, %c0_i32 : i32
    %1 = arith.extui %0 : i1 to i32
    %c0_i32_0 = arith.constant 0 : i32
    %2 = arith.cmpi ne, %1, %c0_i32_0 : i32
    scf.if %2 {
      %c0_66 = arith.constant 0 : index
      %c0_67 = arith.constant 0 : index
      %c0_68 = arith.constant 0 : index
      %133 = vector.load %arg4[%c0_66, %c0_67, %c0_68] : memref<1x8x24xf32, #tpu.memory_space<vmem>>, vector<1x8x24xf32>
      %134 = vector.shape_cast %133 : vector<1x8x24xf32> to vector<8x24xf32>
      %c0_69 = arith.constant 0 : index
      %c0_70 = arith.constant 0 : index
      %135 = vector.load %arg6[%c0_69, %c0_70] : memref<24x64xf32, #tpu.memory_space<vmem>>, vector<24x64xf32>
      %cst_71 = arith.constant dense<0.000000e+00> : vector<8x64xf32>
      %136 = tpu.matmul %134, %135, %cst_71 {dimension_numbers = #tpu.dot_dimension_numbers<[1], [0], [0], [1], [0, 0, 1, 1], [], []>} : vector<8x24xf32>, vector<24x64xf32>, vector<8x64xf32> -> vector<8x64xf32>
      %137 = vector.extract_strided_slice %136 {offsets = [0, 0], sizes = [8, 32], strides = [1, 1]} : vector<8x64xf32> to vector<8x32xf32>
      %c0_72 = arith.constant 0 : index
      %c0_73 = arith.constant 0 : index
      %138 = vector.load %arg8[%c0_72, %c0_73] : memref<8x32xf32, #tpu.memory_space<vmem>>, vector<8x32xf32>
      tpu.vector_store %arg8[%c0_72, %c0_73], %137 {strides = array<i32>} : memref<8x32xf32, #tpu.memory_space<vmem>>, vector<8x32xf32>,
      %139 = vector.extract_strided_slice %136 {offsets = [0, 32], sizes = [8, 32], strides = [1, 1]} : vector<8x64xf32> to vector<8x32xf32>
      %c0_74 = arith.constant 0 : index
      %c0_75 = arith.constant 0 : index
      %140 = vector.load %arg9[%c0_74, %c0_75] : memref<8x32xf32, #tpu.memory_space<vmem>>, vector<8x32xf32>
      tpu.vector_store %arg9[%c0_74, %c0_75], %139 {strides = array<i32>} : memref<8x32xf32, #tpu.memory_space<vmem>>, vector<8x32xf32>,
    } else {
    }
    %c0 = arith.constant 0 : index
    %c0_1 = arith.constant 0 : index
    %c0_2 = arith.constant 0 : index
    %3 = vector.load %arg3[%c0, %c0_1, %c0_2] : memref<1x8x32xf32, #tpu.memory_space<vmem>>, vector<1x8x32xf32>
    %4 = vector.shape_cast %3 : vector<1x8x32xf32> to vector<8x32xf32>
    %c0_3 = arith.constant 0 : index
    %c0_4 = arith.constant 0 : index
    %5 = vector.load %arg5[%c0_3, %c0_4] : memref<32x32xf32, #tpu.memory_space<vmem>>, vector<32x32xf32>
    %cst = arith.constant dense<0.000000e+00> : vector<8x32xf32>
    %6 = tpu.matmul %4, %5, %cst {dimension_numbers = #tpu.dot_dimension_numbers<[1], [0], [0], [1], [0, 0, 1, 1], [], []>} : vector<8x32xf32>, vector<32x32xf32>, vector<8x32xf32> -> vector<8x32xf32>
    %cst_5 = arith.constant 5.000000e-01 : f32
    %7 = vector.broadcast %cst_5 : f32 to vector<8x32xf32>
    %8 = arith.mulf %6, %7 : vector<8x32xf32>
    %9 = vector.extract_strided_slice %8 {offsets = [0, 0], sizes = [8, 4], strides = [1, 1]} : vector<8x32xf32> to vector<8x4xf32>
    %c0_6 = arith.constant 0 : index
    %c0_7 = arith.constant 0 : index
    %10 = vector.load %arg8[%c0_6, %c0_7] : memref<8x32xf32, #tpu.memory_space<vmem>>, vector<8x4xf32>
    %c0_8 = arith.constant 0 : index
    %c0_9 = arith.constant 0 : index
    %11 = vector.load %arg9[%c0_8, %c0_9] : memref<8x32xf32, #tpu.memory_space<vmem>>, vector<8x4xf32>
    %cst_10 = arith.constant dense<0.000000e+00> : vector<8x8xf32>
    %12 = tpu.matmul %9, %10, %cst_10 {dimension_numbers = #tpu.dot_dimension_numbers<[1], [1], [0], [0], [0, 0, 1, 0], [], []>} : vector<8x4xf32>, vector<8x4xf32>, vector<8x8xf32> -> vector<8x8xf32>
    %cst_11 = arith.constant dense<0xFF800000> : vector<8xf32>
    %13 = vector.multi_reduction <maximumf>, %12, %cst_11 [1] : vector<8x8xf32> to vector<8xf32>
    %14 = vector.shape_cast %13 : vector<8xf32> to vector<8x1xf32>
    %15 = vector.broadcast %14 : vector<8x1xf32> to vector<8x8xf32>
    %16 = arith.subf %12, %15 : vector<8x8xf32>
    %17 = math.exp %16 : vector<8x8xf32>
    %cst_12 = arith.constant dense<0.000000e+00> : vector<8xf32>
    %18 = vector.multi_reduction <add>, %17, %cst_12 [1] : vector<8x8xf32> to vector<8xf32>
    %19 = vector.shape_cast %18 : vector<8xf32> to vector<8x1xf32>
    %20 = tpu.reciprocal %19 {approx = true} : vector<8x1xf32> -> vector<8x1xf32>
    %21 = vector.broadcast %20 : vector<8x1xf32> to vector<8x8xf32>
    %22 = arith.mulf %17, %21 : vector<8x8xf32>
    %cst_13 = arith.constant dense<0.000000e+00> : vector<8x4xf32>
    %23 = tpu.matmul %22, %11, %cst_13 {dimension_numbers = #tpu.dot_dimension_numbers<[1], [0], [0], [1], [0, 0, 1, 1], [], []>} : vector<8x8xf32>, vector<8x4xf32>, vector<8x4xf32> -> vector<8x4xf32>
    %24 = vector.extract_strided_slice %8 {offsets = [0, 4], sizes = [8, 4], strides = [1, 1]} : vector<8x32xf32> to vector<8x4xf32>
    %c0_14 = arith.constant 0 : index
    %c4 = arith.constant 4 : index
    %25 = vector.load %arg8[%c0_14, %c4] : memref<8x32xf32, #tpu.memory_space<vmem>>, vector<8x4xf32>
    %c0_15 = arith.constant 0 : index
    %c4_16 = arith.constant 4 : index
    %26 = vector.load %arg9[%c0_15, %c4_16] : memref<8x32xf32, #tpu.memory_space<vmem>>, vector<8x4xf32>
    %cst_17 = arith.constant dense<0.000000e+00> : vector<8x8xf32>
    %27 = tpu.matmul %24, %25, %cst_17 {dimension_numbers = #tpu.dot_dimension_numbers<[1], [1], [0], [0], [0, 0, 1, 0], [], []>} : vector<8x4xf32>, vector<8x4xf32>, vector<8x8xf32> -> vector<8x8xf32>
    %cst_18 = arith.constant dense<0xFF800000> : vector<8xf32>
    %28 = vector.multi_reduction <maximumf>, %27, %cst_18 [1] : vector<8x8xf32> to vector<8xf32>
    %29 = vector.shape_cast %28 : vector<8xf32> to vector<8x1xf32>
    %30 = vector.broadcast %29 : vector<8x1xf32> to vector<8x8xf32>
    %31 = arith.subf %27, %30 : vector<8x8xf32>
    %32 = math.exp %31 : vector<8x8xf32>
    %cst_19 = arith.constant dense<0.000000e+00> : vector<8xf32>
    %33 = vector.multi_reduction <add>, %32, %cst_19 [1] : vector<8x8xf32> to vector<8xf32>
    %34 = vector.shape_cast %33 : vector<8xf32> to vector<8x1xf32>
    %35 = tpu.reciprocal %34 {approx = true} : vector<8x1xf32> -> vector<8x1xf32>
    %36 = vector.broadcast %35 : vector<8x1xf32> to vector<8x8xf32>
    %37 = arith.mulf %32, %36 : vector<8x8xf32>
    %cst_20 = arith.constant dense<0.000000e+00> : vector<8x4xf32>
    %38 = tpu.matmul %37, %26, %cst_20 {dimension_numbers = #tpu.dot_dimension_numbers<[1], [0], [0], [1], [0, 0, 1, 1], [], []>} : vector<8x8xf32>, vector<8x4xf32>, vector<8x4xf32> -> vector<8x4xf32>
    %39 = vector.extract_strided_slice %8 {offsets = [0, 8], sizes = [8, 4], strides = [1, 1]} : vector<8x32xf32> to vector<8x4xf32>
    %c0_21 = arith.constant 0 : index
    %c8 = arith.constant 8 : index
    %40 = vector.load %arg8[%c0_21, %c8] : memref<8x32xf32, #tpu.memory_space<vmem>>, vector<8x4xf32>
    %c0_22 = arith.constant 0 : index
    %c8_23 = arith.constant 8 : index
    %41 = vector.load %arg9[%c0_22, %c8_23] : memref<8x32xf32, #tpu.memory_space<vmem>>, vector<8x4xf32>
    %cst_24 = arith.constant dense<0.000000e+00> : vector<8x8xf32>
    %42 = tpu.matmul %39, %40, %cst_24 {dimension_numbers = #tpu.dot_dimension_numbers<[1], [1], [0], [0], [0, 0, 1, 0], [], []>} : vector<8x4xf32>, vector<8x4xf32>, vector<8x8xf32> -> vector<8x8xf32>
    %cst_25 = arith.constant dense<0xFF800000> : vector<8xf32>
    %43 = vector.multi_reduction <maximumf>, %42, %cst_25 [1] : vector<8x8xf32> to vector<8xf32>
    %44 = vector.shape_cast %43 : vector<8xf32> to vector<8x1xf32>
    %45 = vector.broadcast %44 : vector<8x1xf32> to vector<8x8xf32>
    %46 = arith.subf %42, %45 : vector<8x8xf32>
    %47 = math.exp %46 : vector<8x8xf32>
    %cst_26 = arith.constant dense<0.000000e+00> : vector<8xf32>
    %48 = vector.multi_reduction <add>, %47, %cst_26 [1] : vector<8x8xf32> to vector<8xf32>
    %49 = vector.shape_cast %48 : vector<8xf32> to vector<8x1xf32>
    %50 = tpu.reciprocal %49 {approx = true} : vector<8x1xf32> -> vector<8x1xf32>
    %51 = vector.broadcast %50 : vector<8x1xf32> to vector<8x8xf32>
    %52 = arith.mulf %47, %51 : vector<8x8xf32>
    %cst_27 = arith.constant dense<0.000000e+00> : vector<8x4xf32>
    %53 = tpu.matmul %52, %41, %cst_27 {dimension_numbers = #tpu.dot_dimension_numbers<[1], [0], [0], [1], [0, 0, 1, 1], [], []>} : vector<8x8xf32>, vector<8x4xf32>, vector<8x4xf32> -> vector<8x4xf32>
    %54 = vector.extract_strided_slice %8 {offsets = [0, 12], sizes = [8, 4], strides = [1, 1]} : vector<8x32xf32> to vector<8x4xf32>
    %c0_28 = arith.constant 0 : index
    %c12 = arith.constant 12 : index
    %55 = vector.load %arg8[%c0_28, %c12] : memref<8x32xf32, #tpu.memory_space<vmem>>, vector<8x4xf32>
    %c0_29 = arith.constant 0 : index
    %c12_30 = arith.constant 12 : index
    %56 = vector.load %arg9[%c0_29, %c12_30] : memref<8x32xf32, #tpu.memory_space<vmem>>, vector<8x4xf32>
    %cst_31 = arith.constant dense<0.000000e+00> : vector<8x8xf32>
    %57 = tpu.matmul %54, %55, %cst_31 {dimension_numbers = #tpu.dot_dimension_numbers<[1], [1], [0], [0], [0, 0, 1, 0], [], []>} : vector<8x4xf32>, vector<8x4xf32>, vector<8x8xf32> -> vector<8x8xf32>
    %cst_32 = arith.constant dense<0xFF800000> : vector<8xf32>
    %58 = vector.multi_reduction <maximumf>, %57, %cst_32 [1] : vector<8x8xf32> to vector<8xf32>
    %59 = vector.shape_cast %58 : vector<8xf32> to vector<8x1xf32>
    %60 = vector.broadcast %59 : vector<8x1xf32> to vector<8x8xf32>
    %61 = arith.subf %57, %60 : vector<8x8xf32>
    %62 = math.exp %61 : vector<8x8xf32>
    %cst_33 = arith.constant dense<0.000000e+00> : vector<8xf32>
    %63 = vector.multi_reduction <add>, %62, %cst_33 [1] : vector<8x8xf32> to vector<8xf32>
    %64 = vector.shape_cast %63 : vector<8xf32> to vector<8x1xf32>
    %65 = tpu.reciprocal %64 {approx = true} : vector<8x1xf32> -> vector<8x1xf32>
    %66 = vector.broadcast %65 : vector<8x1xf32> to vector<8x8xf32>
    %67 = arith.mulf %62, %66 : vector<8x8xf32>
    %cst_34 = arith.constant dense<0.000000e+00> : vector<8x4xf32>
    %68 = tpu.matmul %67, %56, %cst_34 {dimension_numbers = #tpu.dot_dimension_numbers<[1], [0], [0], [1], [0, 0, 1, 1], [], []>} : vector<8x8xf32>, vector<8x4xf32>, vector<8x4xf32> -> vector<8x4xf32>
    %69 = vector.extract_strided_slice %8 {offsets = [0, 16], sizes = [8, 4], strides = [1, 1]} : vector<8x32xf32> to vector<8x4xf32>
    %c0_35 = arith.constant 0 : index
    %c16 = arith.constant 16 : index
    %70 = vector.load %arg8[%c0_35, %c16] : memref<8x32xf32, #tpu.memory_space<vmem>>, vector<8x4xf32>
    %c0_36 = arith.constant 0 : index
    %c16_37 = arith.constant 16 : index
    %71 = vector.load %arg9[%c0_36, %c16_37] : memref<8x32xf32, #tpu.memory_space<vmem>>, vector<8x4xf32>
    %cst_38 = arith.constant dense<0.000000e+00> : vector<8x8xf32>
    %72 = tpu.matmul %69, %70, %cst_38 {dimension_numbers = #tpu.dot_dimension_numbers<[1], [1], [0], [0], [0, 0, 1, 0], [], []>} : vector<8x4xf32>, vector<8x4xf32>, vector<8x8xf32> -> vector<8x8xf32>
    %cst_39 = arith.constant dense<0xFF800000> : vector<8xf32>
    %73 = vector.multi_reduction <maximumf>, %72, %cst_39 [1] : vector<8x8xf32> to vector<8xf32>
    %74 = vector.shape_cast %73 : vector<8xf32> to vector<8x1xf32>
    %75 = vector.broadcast %74 : vector<8x1xf32> to vector<8x8xf32>
    %76 = arith.subf %72, %75 : vector<8x8xf32>
    %77 = math.exp %76 : vector<8x8xf32>
    %cst_40 = arith.constant dense<0.000000e+00> : vector<8xf32>
    %78 = vector.multi_reduction <add>, %77, %cst_40 [1] : vector<8x8xf32> to vector<8xf32>
    %79 = vector.shape_cast %78 : vector<8xf32> to vector<8x1xf32>
    %80 = tpu.reciprocal %79 {approx = true} : vector<8x1xf32> -> vector<8x1xf32>
    %81 = vector.broadcast %80 : vector<8x1xf32> to vector<8x8xf32>
    %82 = arith.mulf %77, %81 : vector<8x8xf32>
    %cst_41 = arith.constant dense<0.000000e+00> : vector<8x4xf32>
    %83 = tpu.matmul %82, %71, %cst_41 {dimension_numbers = #tpu.dot_dimension_numbers<[1], [0], [0], [1], [0, 0, 1, 1], [], []>} : vector<8x8xf32>, vector<8x4xf32>, vector<8x4xf32> -> vector<8x4xf32>
    %84 = vector.extract_strided_slice %8 {offsets = [0, 20], sizes = [8, 4], strides = [1, 1]} : vector<8x32xf32> to vector<8x4xf32>
    %c0_42 = arith.constant 0 : index
    %c20 = arith.constant 20 : index
    %85 = vector.load %arg8[%c0_42, %c20] : memref<8x32xf32, #tpu.memory_space<vmem>>, vector<8x4xf32>
    %c0_43 = arith.constant 0 : index
    %c20_44 = arith.constant 20 : index
    %86 = vector.load %arg9[%c0_43, %c20_44] : memref<8x32xf32, #tpu.memory_space<vmem>>, vector<8x4xf32>
    %cst_45 = arith.constant dense<0.000000e+00> : vector<8x8xf32>
    %87 = tpu.matmul %84, %85, %cst_45 {dimension_numbers = #tpu.dot_dimension_numbers<[1], [1], [0], [0], [0, 0, 1, 0], [], []>} : vector<8x4xf32>, vector<8x4xf32>, vector<8x8xf32> -> vector<8x8xf32>
    %cst_46 = arith.constant dense<0xFF800000> : vector<8xf32>
    %88 = vector.multi_reduction <maximumf>, %87, %cst_46 [1] : vector<8x8xf32> to vector<8xf32>
    %89 = vector.shape_cast %88 : vector<8xf32> to vector<8x1xf32>
    %90 = vector.broadcast %89 : vector<8x1xf32> to vector<8x8xf32>
    %91 = arith.subf %87, %90 : vector<8x8xf32>
    %92 = math.exp %91 : vector<8x8xf32>
    %cst_47 = arith.constant dense<0.000000e+00> : vector<8xf32>
    %93 = vector.multi_reduction <add>, %92, %cst_47 [1] : vector<8x8xf32> to vector<8xf32>
    %94 = vector.shape_cast %93 : vector<8xf32> to vector<8x1xf32>
    %95 = tpu.reciprocal %94 {approx = true} : vector<8x1xf32> -> vector<8x1xf32>
    %96 = vector.broadcast %95 : vector<8x1xf32> to vector<8x8xf32>
    %97 = arith.mulf %92, %96 : vector<8x8xf32>
    %cst_48 = arith.constant dense<0.000000e+00> : vector<8x4xf32>
    %98 = tpu.matmul %97, %86, %cst_48 {dimension_numbers = #tpu.dot_dimension_numbers<[1], [0], [0], [1], [0, 0, 1, 1], [], []>} : vector<8x8xf32>, vector<8x4xf32>, vector<8x4xf32> -> vector<8x4xf32>
    %99 = vector.extract_strided_slice %8 {offsets = [0, 24], sizes = [8, 4], strides = [1, 1]} : vector<8x32xf32> to vector<8x4xf32>
    %c0_49 = arith.constant 0 : index
    %c24 = arith.constant 24 : index
    %100 = vector.load %arg8[%c0_49, %c24] : memref<8x32xf32, #tpu.memory_space<vmem>>, vector<8x4xf32>
    %c0_50 = arith.constant 0 : index
    %c24_51 = arith.constant 24 : index
    %101 = vector.load %arg9[%c0_50, %c24_51] : memref<8x32xf32, #tpu.memory_space<vmem>>, vector<8x4xf32>
    %cst_52 = arith.constant dense<0.000000e+00> : vector<8x8xf32>
    %102 = tpu.matmul %99, %100, %cst_52 {dimension_numbers = #tpu.dot_dimension_numbers<[1], [1], [0], [0], [0, 0, 1, 0], [], []>} : vector<8x4xf32>, vector<8x4xf32>, vector<8x8xf32> -> vector<8x8xf32>
    %cst_53 = arith.constant dense<0xFF800000> : vector<8xf32>
    %103 = vector.multi_reduction <maximumf>, %102, %cst_53 [1] : vector<8x8xf32> to vector<8xf32>
    %104 = vector.shape_cast %103 : vector<8xf32> to vector<8x1xf32>
    %105 = vector.broadcast %104 : vector<8x1xf32> to vector<8x8xf32>
    %106 = arith.subf %102, %105 : vector<8x8xf32>
    %107 = math.exp %106 : vector<8x8xf32>
    %cst_54 = arith.constant dense<0.000000e+00> : vector<8xf32>
    %108 = vector.multi_reduction <add>, %107, %cst_54 [1] : vector<8x8xf32> to vector<8xf32>
    %109 = vector.shape_cast %108 : vector<8xf32> to vector<8x1xf32>
    %110 = tpu.reciprocal %109 {approx = true} : vector<8x1xf32> -> vector<8x1xf32>
    %111 = vector.broadcast %110 : vector<8x1xf32> to vector<8x8xf32>
    %112 = arith.mulf %107, %111 : vector<8x8xf32>
    %cst_55 = arith.constant dense<0.000000e+00> : vector<8x4xf32>
    %113 = tpu.matmul %112, %101, %cst_55 {dimension_numbers = #tpu.dot_dimension_numbers<[1], [0], [0], [1], [0, 0, 1, 1], [], []>} : vector<8x8xf32>, vector<8x4xf32>, vector<8x4xf32> -> vector<8x4xf32>
    %114 = vector.extract_strided_slice %8 {offsets = [0, 28], sizes = [8, 4], strides = [1, 1]} : vector<8x32xf32> to vector<8x4xf32>
    %c0_56 = arith.constant 0 : index
    %c28 = arith.constant 28 : index
    %115 = vector.load %arg8[%c0_56, %c28] : memref<8x32xf32, #tpu.memory_space<vmem>>, vector<8x4xf32>
    %c0_57 = arith.constant 0 : index
    %c28_58 = arith.constant 28 : index
    %116 = vector.load %arg9[%c0_57, %c28_58] : memref<8x32xf32, #tpu.memory_space<vmem>>, vector<8x4xf32>
    %cst_59 = arith.constant dense<0.000000e+00> : vector<8x8xf32>
    %117 = tpu.matmul %114, %115, %cst_59 {dimension_numbers = #tpu.dot_dimension_numbers<[1], [1], [0], [0], [0, 0, 1, 0], [], []>} : vector<8x4xf32>, vector<8x4xf32>, vector<8x8xf32> -> vector<8x8xf32>
    %cst_60 = arith.constant dense<0xFF800000> : vector<8xf32>
    %118 = vector.multi_reduction <maximumf>, %117, %cst_60 [1] : vector<8x8xf32> to vector<8xf32>
    %119 = vector.shape_cast %118 : vector<8xf32> to vector<8x1xf32>
    %120 = vector.broadcast %119 : vector<8x1xf32> to vector<8x8xf32>
    %121 = arith.subf %117, %120 : vector<8x8xf32>
    %122 = math.exp %121 : vector<8x8xf32>
    %cst_61 = arith.constant dense<0.000000e+00> : vector<8xf32>
    %123 = vector.multi_reduction <add>, %122, %cst_61 [1] : vector<8x8xf32> to vector<8xf32>
    %124 = vector.shape_cast %123 : vector<8xf32> to vector<8x1xf32>
    %125 = tpu.reciprocal %124 {approx = true} : vector<8x1xf32> -> vector<8x1xf32>
    %126 = vector.broadcast %125 : vector<8x1xf32> to vector<8x8xf32>
    %127 = arith.mulf %122, %126 : vector<8x8xf32>
    %cst_62 = arith.constant dense<0.000000e+00> : vector<8x4xf32>
    %128 = tpu.matmul %127, %116, %cst_62 {dimension_numbers = #tpu.dot_dimension_numbers<[1], [0], [0], [1], [0, 0, 1, 1], [], []>} : vector<8x8xf32>, vector<8x4xf32>, vector<8x4xf32> -> vector<8x4xf32>
    %129 = tpu.concatenate %23, %38, %53, %68, %83, %98, %113, %128 in 1 : vector<8x4xf32>, vector<8x4xf32>, vector<8x4xf32>, vector<8x4xf32>, vector<8x4xf32>, vector<8x4xf32>, vector<8x4xf32>, vector<8x4xf32> -> vector<8x32xf32>
    %c0_63 = arith.constant 0 : index
    %c0_64 = arith.constant 0 : index
    %c0_65 = arith.constant 0 : index
    %130 = vector.load %arg7[%c0_63, %c0_64, %c0_65] : memref<1x8x32xf32, #tpu.memory_space<vmem>>, vector<1x8x32xf32>
    %131 = vector.shape_cast %130 : vector<1x8x32xf32> to vector<8x32xf32>
    %132 = vector.shape_cast %129 : vector<8x32xf32> to vector<1x8x32xf32>
    tpu.vector_store %arg7[%c0_63, %c0_64, %c0_65], %132 {strides = array<i32>} : memref<1x8x32xf32, #tpu.memory_space<vmem>>, vector<1x8x32xf32>,
    return
  }
  func.func @transform_0(%arg0: i32, %arg1: i32, %arg2: i32) -> (i32, i32, i32) {
    %c2_i32 = arith.constant 2 : i32
    %0 = arith.muli %arg1, %c2_i32 : i32
    %1 = arith.addi %0, %arg2 : i32
    %c0_i32 = arith.constant 0 : i32
    %c0_i32_0 = arith.constant 0 : i32
    return %arg0, %1, %c0_i32 : i32, i32, i32
  }
  func.func @transform_1(%arg0: i32, %arg1: i32, %arg2: i32) -> (i32, i32, i32) {
    %c0_i32 = arith.constant 0 : i32
    %c0_i32_0 = arith.constant 0 : i32
    %c0_i32_1 = arith.constant 0 : i32
    return %arg0, %c0_i32, %c0_i32_0 : i32, i32, i32
  }
  func.func @transform_2(%arg0: i32, %arg1: i32, %arg2: i32) -> (i32, i32) {
    %c0_i32 = arith.constant 0 : i32
    %c0_i32_0 = arith.constant 0 : i32
    %c0_i32_1 = arith.constant 0 : i32
    return %c0_i32, %c0_i32_0 : i32, i32
  }
  func.func @transform_3(%arg0: i32, %arg1: i32, %arg2: i32) -> (i32, i32) {
    %c0_i32 = arith.constant 0 : i32
    %c0_i32_0 = arith.constant 0 : i32
    %c0_i32_1 = arith.constant 0 : i32
    return %c0_i32, %c0_i32_0 : i32, i32
  }
  func.func @transform_4(%arg0: i32, %arg1: i32, %arg2: i32) -> (i32, i32, i32) {
    %c2_i32 = arith.constant 2 : i32
    %0 = arith.muli %arg1, %c2_i32 : i32
    %1 = arith.addi %0, %arg2 : i32
    %c0_i32 = arith.constant 0 : i32
    %c0_i32_0 = arith.constant 0 : i32
    return %arg0, %1, %c0_i32 : i32, i32, i32
  }
}

</mosaic_0001>

<llo_original>
// kernel: tpu_custom_call.1
$region0: #{tpu_custom_call.1}
  #allocation0 [shape = 'u32[]', space=smem, size = 0x4, offset = 0x4, fixed_abs, tag = 'smem constant byte address 0x4 - core index']
  #allocation1 [shape = 'u32[144,128]{1,0:T(1,128)}', space=vmem, size = 0x12000, scoped, tag = 'internal scratch']
  #allocation2 [shape = 'f32[8,32]{1,0:T(8,128)}', space=vmem, size = 0x1000, scoped, tag = 'scratch operand']
  #allocation3 [shape = 'f32[8,32]{1,0:T(8,128)}', space=vmem, size = 0x1000, scoped, tag = 'scratch operand']
  %s0 = inlined_call_operand.hbm [shape: f32[2,16,32], index: 0, kind: input, shape index: {}]
  %s1 = inlined_call_operand.hbm [shape: f32[2,8,24], index: 1, kind: input, shape index: {}]
  %s2 = inlined_call_operand.hbm [shape: f32[32,32], index: 2, kind: input, shape index: {}]
  %s3 = inlined_call_operand.hbm [shape: f32[24,64], index: 3, kind: input, shape index: {}]
  %s4 = inlined_call_operand.hbm [shape: f32[2,16,32], index: 4, kind: output, shape index: {}]
  %s5 = sld [smem:[#allocation0]]
  $region69: #{tpu_custom_call.1} parent=0
    _
  %s7 = ssub.s32 1, %s5
  %s8 = scalar_select 0, %s7, %s5
  $region1: #{tpu_custom_call.1} parent=0
    #allocation4 [shape = 'u8[8192]{0}', space=vmem, size = 0x2000, scoped, tag = 'input window, operand 0']
    #allocation5 [shape = 's32[2]{0}', space=sflag, size = 0x8, scoped, tag = 'scoped memory for tpu_custom_call.1']
    #allocation6 [shape = 's32[2]{0}', space=sflag, size = 0x8, scoped, tag = 'scoped memory for tpu_custom_call.1']
    #allocation7 [shape = 'u8[8192]{0}', space=vmem, size = 0x2000, scoped, tag = 'input window, operand 1']
    #allocation8 [shape = 's32[2]{0}', space=sflag, size = 0x8, scoped, tag = 'scoped memory for tpu_custom_call.1']
    #allocation9 [shape = 'u8[16384]{0}', space=vmem, size = 0x4000, scoped, tag = 'input window, operand 2, single buffered']
    #allocation10 [shape = 'u8[12288]{0}', space=vmem, size = 0x3000, scoped, tag = 'input window, operand 3, single buffered']
    #allocation11 [shape = 's32[1]{0}', space=sflag, size = 0x4, scoped, tag = 'scoped memory for tpu_custom_call.1']
    #allocation12 [shape = 'u8[8192]{0}', space=vmem, size = 0x2000, scoped, tag = 'output window, operand 0']
    %9 = vsyncpa [#allocation5], 0
    %s10 = scalar_lea.sflag [#allocation5], 1
    %11 = vsyncpa %s10, 0
    %12 = vsyncpa [#allocation8], 0
    %s13 = scalar_lea.sflag [#allocation8], 1
    %14 = vsyncpa %s13, 0
    %15 = vsyncpa [#allocation11], 0
    %16 = vsyncpa [#allocation6], 0
    %s17 = scalar_lea.sflag [#allocation6], 1
    %18 = vsyncpa %s17, 0
    loop: start=0, step=1, limit=6
    $region2: #{tpu_custom_call.1} parent=1 // loop_pre_header
      _
    $region3: #{tpu_custom_call.1} parent=1 // loop_header
      %s20 = sphi 0, %s24
      %p21 = scmp.ge.s32.totalorder %s20, 6
      %s27 = sphi 0, %s46
      %s28 = sphi 0, %s42
      %s29 = sphi 0, %s38
      %s30 = sphi 0, %s27
      %s31 = sphi 0, %s28
      %s32 = sphi 0, %s29
      %s33 = sphi 0, %s30
      %s34 = sphi 0, %s31
      %s35 = sphi 0, %s32
      %s55 = sphi 0, %s57
      %s58 = sphi 0, %s55
      %s59 = sphi 0, %s58
      %s75 = sphi 0, %s59
      %s81 = sphi 0, %s83
      %s84 = sphi 0, %s81
      %s85 = sphi 0, %s84
      %s101 = sphi 0, %s85
      %s105 = sphi 0, %s105
      %s107 = sphi 0, %s105
      %s108 = sphi 0, %s107
      %s122 = sphi 0, %s108
      %s126 = sphi 0, %s126
      %s128 = sphi 0, %s126
      %s129 = sphi 0, %s128
      %s143 = sphi 0, %s129
      %s155 = sphi 0, %s157
      %s158 = sphi 0, %s155
      %s159 = sphi 0, %s158
      %s175 = sphi 0, %s159
    $region4: #{tpu_custom_call.1} parent=1 // loop_header_branch
      %23 = sbr.rel (%p21) target = $region8
    $region5: #{tpu_custom_call.1} parent=1 // loop_body
      %s25 = ssub.s32 %s20, 1
      %s26 = ssub.s32 %s20, 2
      %s36 = sadd.s32 1, %s29
      %p37 = scmp.ge.s32.totalorder %s36, 2
      %s38 = scalar_select %p37, 0, %s36
      %s39 = sadd.s32 1, %s28
      %s40 = scalar_select %p37, %s39, %s28
      %p41 = scmp.ge.s32.totalorder %s40, 1
      %s42 = scalar_select %p41, 0, %s40
      %s43 = sadd.s32 1, %s27
      %s44 = scalar_select %p41, %s43, %s27
      %p45 = scmp.ge.s32.totalorder %s44, 2
      %s46 = scalar_select %p45, 0, %s44
      %s47 = smul.u32 %s28, 2
      %s48 = sadd.s32 %s47, %s29
      %s49 = smul.u32 %s42, 2
      %s50 = sadd.s32 %s49, %s38
      %s51 = ssub.s32 %s27, %s46
      %s52 = ssub.s32 %s48, %s50
      %s53 = sor.u32 %s51, %s52
      %p54 = scmp.eq.s32.totalorder %s53, 0
      %s56 = sadd.s32 %s55, 1
      %s57 = scalar_select %p54, %s55, %s56
      %p60 = pneg %p54
      %p61 = scmp.eq.s32.totalorder %s20, 3
      %p62 = por %p60, %p61
      %p63 = scmp.ne.s32.totalorder %s55, %s58
      %p64 = scmp.eq.s32.totalorder %s20, 0
      %p65 = por %p63, %p64
      %p66 = scmp.ne.s32.totalorder %s55, %s58
      %p67 = scmp.eq.s32.totalorder %s25, 3
      %p68 = por %p66, %p67
      %p69 = scmp.ne.s32.totalorder %s58, %s59
      %p70 = scmp.eq.s32.totalorder %s25, 0
      %p71 = por %p69, %p70
      %p72 = scmp.ne.s32.totalorder %s58, %s59
      %p73 = scmp.eq.s32.totalorder %s26, 3
      %p74 = por %p72, %p73
      %p76 = scmp.ne.s32.totalorder %s59, %s75
      %p77 = scmp.eq.s32.totalorder %s26, 0
      %p78 = por %p76, %p77
      %s79 = ssub.s32 %s27, %s46
      %p80 = scmp.eq.s32.totalorder %s79, 0
      %s82 = sadd.s32 %s81, 1
      %s83 = scalar_select %p80, %s81, %s82
      %p86 = pneg %p80
      %p87 = scmp.eq.s32.totalorder %s20, 3
      %p88 = por %p86, %p87
      %p89 = scmp.ne.s32.totalorder %s81, %s84
      %p90 = scmp.eq.s32.totalorder %s20, 0
      %p91 = por %p89, %p90
      %p92 = scmp.ne.s32.totalorder %s81, %s84
      %p93 = scmp.eq.s32.totalorder %s25, 3
      %p94 = por %p92, %p93
      %p95 = scmp.ne.s32.totalorder %s84, %s85
      %p96 = scmp.eq.s32.totalorder %s25, 0
      %p97 = por %p95, %p96
      %p98 = scmp.ne.s32.totalorder %s84, %s85
      %p99 = scmp.eq.s32.totalorder %s26, 3
      %p100 = por %p98, %p99
      %p102 = scmp.ne.s32.totalorder %s85, %s101
      %p103 = scmp.eq.s32.totalorder %s26, 0
      %p104 = por %p102, %p103
      %s106 = sadd.s32 %s105, 1
      %p109 = scmp.eq.s32.totalorder %s20, 3
      %p110 = scmp.ne.s32.totalorder %s105, %s107
      %p111 = scmp.eq.s32.totalorder %s20, 0
      %p112 = por %p110, %p111
      %p113 = scmp.ne.s32.totalorder %s105, %s107
      %p114 = scmp.eq.s32.totalorder %s25, 3
      %p115 = por %p113, %p114
      %p116 = scmp.ne.s32.totalorder %s107, %s108
      %p117 = scmp.eq.s32.totalorder %s25, 0
      %p118 = por %p116, %p117
      %p119 = scmp.ne.s32.totalorder %s107, %s108
      %p120 = scmp.eq.s32.totalorder %s26, 3
      %p121 = por %p119, %p120
      %p123 = scmp.ne.s32.totalorder %s108, %s122
      %p124 = scmp.eq.s32.totalorder %s26, 0
      %p125 = por %p123, %p124
      %s127 = sadd.s32 %s126, 1
      %p130 = scmp.eq.s32.totalorder %s20, 3
      %p131 = scmp.ne.s32.totalorder %s126, %s128
      %p132 = scmp.eq.s32.totalorder %s20, 0
      %p133 = por %p131, %p132
      %p134 = scmp.ne.s32.totalorder %s126, %s128
      %p135 = scmp.eq.s32.totalorder %s25, 3
      %p136 = por %p134, %p135
      %p137 = scmp.ne.s32.totalorder %s128, %s129
      %p138 = scmp.eq.s32.totalorder %s25, 0
      %p139 = por %p137, %p138
      %p140 = scmp.ne.s32.totalorder %s128, %s129
      %p141 = scmp.eq.s32.totalorder %s26, 3
      %p142 = por %p140, %p141
      %p144 = scmp.ne.s32.totalorder %s129, %s143
      %p145 = scmp.eq.s32.totalorder %s26, 0
      %p146 = por %p144, %p145
      %s147 = smul.u32 %s28, 2
      %s148 = sadd.s32 %s147, %s29
      %s149 = smul.u32 %s42, 2
      %s150 = sadd.s32 %s149, %s38
      %s151 = ssub.s32 %s27, %s46
      %s152 = ssub.s32 %s148, %s150
      %s153 = sor.u32 %s151, %s152
      %p154 = scmp.eq.s32.totalorder %s153, 0
      %s156 = sadd.s32 %s155, 1
      %s157 = scalar_select %p154, %s155, %s156
      %p160 = pneg %p154
      %p161 = scmp.eq.s32.totalorder %s20, 3
      %p162 = por %p160, %p161
      %p163 = scmp.ne.s32.totalorder %s155, %s158
      %p164 = scmp.eq.s32.totalorder %s20, 0
      %p165 = por %p163, %p164
      %p166 = scmp.ne.s32.totalorder %s155, %s158
      %p167 = scmp.eq.s32.totalorder %s25, 3
      %p168 = por %p166, %p167
      %p169 = scmp.ne.s32.totalorder %s158, %s159
      %p170 = scmp.eq.s32.totalorder %s25, 0
      %p171 = por %p169, %p170
      %p172 = scmp.ne.s32.totalorder %s158, %s159
      %p173 = scmp.eq.s32.totalorder %s26, 3
      %p174 = por %p172, %p173
      %p176 = scmp.ne.s32.totalorder %s159, %s175
      %p177 = scmp.eq.s32.totalorder %s26, 0
      %p178 = por %p176, %p177
      %p179 = scmp.le.s32.totalorder 1, %s20
      %p180 = scmp.lt.s32.totalorder %s20, 5
      %p181 = pnand %p179, %p180
      %p182 = pneg %p181
      // Predicated region
      $region9: #{tpu_custom_call.1} parent=5 // pred_check
        _
      $region10: #{tpu_custom_call.1} parent=5 // pred_check_branch
        %184 = sbr.rel (%p181) target = $region12
      $region11: #{tpu_custom_call.1} parent=5 // pred_region
        %s185 = ssub.s32 %s20, 1
        // Predicated region
        $region13: #{tpu_custom_call.1} parent=11 // pred_check
          %p186 = pneg %p118
        $region14: #{tpu_custom_call.1} parent=11 // pred_check_branch
          %188 = sbr.rel (%p186) target = $region16
        $region15: #{tpu_custom_call.1} parent=11 // pred_region
          %s190 = ssub.s32 512, 512
          %191 = vsyncadd [#allocation8], %s190
          %s192 = sshll.u32 [#allocation9], 4
          %s193 = int_to_ptr.vmem [resolvable:$true] %s192
          %198 = dma.hbm_to_vmem [thread:$0]  %s2, 512, %s193, [#allocation8], 128, 128, 8
        $region16: #{tpu_custom_call.1} parent=11 // pred_fallthru
          _
        // Predicated region
        $region17: #{tpu_custom_call.1} parent=11 // pred_check
          %p199 = pneg %p139
        $region18: #{tpu_custom_call.1} parent=11 // pred_check_branch
          %201 = sbr.rel (%p199) target = $region20
        $region19: #{tpu_custom_call.1} parent=11 // pred_region
          %s203 = ssub.s32 384, 384
          %204 = vsyncadd [#allocation11], %s203
          %s205 = sshll.u32 [#allocation10], 4
          %s206 = int_to_ptr.vmem [resolvable:$true] %s205
          %211 = dma.hbm_to_vmem [thread:$0]  %s3, 384, %s206, [#allocation11], 128, 128, 8
        $region20: #{tpu_custom_call.1} parent=11 // pred_fallthru
          _
      $region12: #{tpu_custom_call.1} parent=5 // pred_fallthru
        _
      %p212 = scmp.lt.s32.totalorder %s20, 4
      // Predicated region
      $region21: #{tpu_custom_call.1} parent=5 // pred_check
        %p213 = pneg %p212
      $region22: #{tpu_custom_call.1} parent=5 // pred_check_branch
        %215 = sbr.rel (%p213) target = $region24
      $region23: #{tpu_custom_call.1} parent=5 // pred_region
        // Predicated region
        $region25: #{tpu_custom_call.1} parent=23 // pred_check
          %p216 = pneg %p65
        $region26: #{tpu_custom_call.1} parent=23 // pred_check_branch
          %218 = sbr.rel (%p216) target = $region28
        $region27: #{tpu_custom_call.1} parent=23 // pred_region
          %s219 = sand.u32 %s55, 1
          %s220 = scalar_lea.sflag [#allocation5], %s219
          %s221 = sand.u32 %s55, 1
          %s222 = smul.addr %s221, 8
          %s223 = scalar_lea.vmem [#allocation4], %s222
          %s224 = smul.u32 %s28, 2
          %s225 = sadd.s32 %s224, %s29
          %s227 = ssub.s32 128, 128
          %228 = vsyncadd %s220, %s227
          %s229 = smul.addr %s27, 2
          %s230 = sadd.s32 %s225, %s229
          %s231 = smul.addr %s230, 128
          %s232 = scalar_lea.hbm %s0, %s231
          %s234 = sshll.u32 %s223, 4
          %s235 = int_to_ptr.vmem [resolvable:$true] %s234
          %237 = dma.hbm_to_vmem [thread:$0]  %s232, 128, %s235, %s220
        $region28: #{tpu_custom_call.1} parent=23 // pred_fallthru
          _
        // Predicated region
        $region29: #{tpu_custom_call.1} parent=23 // pred_check
          %p238 = pneg %p91
        $region30: #{tpu_custom_call.1} parent=23 // pred_check_branch
          %240 = sbr.rel (%p238) target = $region32
        $region31: #{tpu_custom_call.1} parent=23 // pred_region
          %s241 = sand.u32 %s20, 1
          %s242 = scalar_lea.sflag [#allocation8], %s241
          %s243 = sand.u32 %s81, 1
          %s244 = smul.addr %s243, 8
          %s245 = scalar_lea.vmem [#allocation7], %s244
          %s247 = ssub.s32 128, 128
          %248 = vsyncadd %s242, %s247
          %s249 = smul.addr %s27, 128
          %s250 = scalar_lea.hbm %s1, %s249
          %s252 = sshll.u32 %s245, 4
          %s253 = int_to_ptr.vmem [resolvable:$true] %s252
          %255 = dma.hbm_to_vmem [thread:$0]  %s250, 128, %s253, %s242
        $region32: #{tpu_custom_call.1} parent=23 // pred_fallthru
          _
      $region24: #{tpu_custom_call.1} parent=5 // pred_fallthru
        _
      %p256 = scmp.le.s32.totalorder 1, %s20
      %p257 = scmp.lt.s32.totalorder %s20, 5
      %p258 = pnand %p256, %p257
      %p259 = pneg %p258
      // Predicated region
      $region33: #{tpu_custom_call.1} parent=5 // pred_check
        _
      $region34: #{tpu_custom_call.1} parent=5 // pred_check_branch
        %261 = sbr.rel (%p258) target = $region36
      $region35: #{tpu_custom_call.1} parent=5 // pred_region
        %s262 = ssub.s32 %s20, 1
        %s263 = sand.u32 %s58, 1
        %s264 = scalar_lea.sflag [#allocation5], %s263
        %s265 = sand.u32 %s58, 1
        %s266 = smul.addr %s265, 8
        %s267 = scalar_lea.vmem [#allocation4], %s266
        // Predicated region
        $region37: #{tpu_custom_call.1} parent=35 // pred_check
          %p268 = pneg %p71
        $region38: #{tpu_custom_call.1} parent=35 // pred_check_branch
          %270 = sbr.rel (%p268) target = $region40
        $region39: #{tpu_custom_call.1} parent=35 // pred_region
          %271 = dma.done %s264, 128
        $region40: #{tpu_custom_call.1} parent=35 // pred_fallthru
          _
        %s272 = sand.u32 %s25, 1
        %s273 = scalar_lea.sflag [#allocation8], %s272
        %s274 = sand.u32 %s84, 1
        %s275 = smul.addr %s274, 8
        %s276 = scalar_lea.vmem [#allocation7], %s275
        // Predicated region
        $region41: #{tpu_custom_call.1} parent=35 // pred_check
          %p277 = pneg %p97
        $region42: #{tpu_custom_call.1} parent=35 // pred_check_branch
          %279 = sbr.rel (%p277) target = $region44
        $region43: #{tpu_custom_call.1} parent=35 // pred_region
          %280 = dma.done %s273, 128
        $region44: #{tpu_custom_call.1} parent=35 // pred_fallthru
          _
        // Predicated region
        $region45: #{tpu_custom_call.1} parent=35 // pred_check
          %p281 = pneg %p118
        $region46: #{tpu_custom_call.1} parent=35 // pred_check_branch
          %283 = sbr.rel (%p281) target = $region48
        $region47: #{tpu_custom_call.1} parent=35 // pred_region
          %284 = dma.done [#allocation8], 512
        $region48: #{tpu_custom_call.1} parent=35 // pred_fallthru
          _
        // Predicated region
        $region49: #{tpu_custom_call.1} parent=35 // pred_check
          %p285 = pneg %p139
        $region50: #{tpu_custom_call.1} parent=35 // pred_check_branch
          %287 = sbr.rel (%p285) target = $region52
        $region51: #{tpu_custom_call.1} parent=35 // pred_region
          %288 = dma.done [#allocation11], 384
        $region52: #{tpu_custom_call.1} parent=35 // pred_fallthru
          _
        %s289 = sand.u32 %s58, 1
        %s290 = scalar_lea.sflag [#allocation5], %s289
        %s291 = sand.u32 %s58, 1
        %s292 = smul.addr %s291, 8
        %s293 = scalar_lea.vmem [#allocation4], %s292
        %p294 = pneg %p71
        %p295 = pneg %p68
        %s296 = sand.u32 %s25, 1
        %s297 = scalar_lea.sflag [#allocation8], %s296
        %s298 = sand.u32 %s84, 1
        %s299 = smul.addr %s298, 8
        %s300 = scalar_lea.vmem [#allocation7], %s299
        %p301 = pneg %p97
        %p302 = pneg %p94
        %p303 = pneg %p118
        %p304 = pneg %p115
        %p305 = pneg %p139
        %p306 = pneg %p136
        %p307 = pneg %p171
        %p308 = pneg %p168
        %s309 = sand.u32 %s158, 1
        %s310 = scalar_lea.sflag [#allocation6], %s309
        %s311 = sand.u32 %s158, 1
        %s312 = smul.addr %s311, 8
        %s313 = scalar_lea.vmem [#allocation12], %s312
        %s314 = smul.u32 %s31, 2
        %s315 = sadd.s32 %s314, %s32
        %s316 = smul.u32 %s31, 2
        %s317 = sadd.s32 %s316, %s32
        %p318 = scmp.eq.s32.totalorder %s32, 0
        // Predicated region
        $region53: #{tpu_custom_call.1} parent=35 // pred_check
          %p319 = pneg %p318
        $region54: #{tpu_custom_call.1} parent=35 // pred_check_branch
          %321 = sbr.rel (%p319) target = $region56
        $region55: #{tpu_custom_call.1} parent=35 // pred_region
          %v322 = vld [vmem:[%s276] sm:$0xff]
          %v323 = vld [vmem:[#allocation10] sm:$0xff]
          %v324 = vld [vmem:[#allocation10 + $0x8] sm:$0xff]
          %v325 = vld [vmem:[#allocation10 + $0x10] sm:$0xff]
          %vm326 = vcmask 195584
          %v328 = vsel %vm326, %v322, 0
          %330 = vmatprep.subr.mxu0 0.0
          %331 = vmatpush1.msra.mxu0 0.0
          %332 = vmatprep.subr.mxu0 0.0
          %333 = vmatpush1.msra.mxu0 0.0
          %334 = vmatprep.subr.mxu0 0.0
          %335 = vmatpush1.msra.mxu0 0.0
          %336 = vmatprep.subr.mxu0 0.0
          %337 = vmatpush1.msra.mxu0 0.0
          %338 = vmatprep.subr.mxu0 0.0
          %339 = vmatpush1.msra.mxu0 0.0
          %340 = vmatprep.subr.mxu0 0.0
          %341 = vmatpush1.msra.mxu0 0.0
          %342 = vmatprep.subr.mxu0 0.0
          %343 = vmatpush1.msra.mxu0 0.0
          %344 = vmatprep.subr.mxu0 0.0
          %345 = vmatpush1.msra.mxu0 0.0
          %346 = vmatprep.subr.mxu0 0.0
          %347 = vmatpush1.msra.mxu0 0.0
          %348 = vmatprep.subr.mxu0 0.0
          %349 = vmatpush1.msra.mxu0 0.0
          %350 = vmatprep.subr.mxu0 0.0
          %351 = vmatpush1.msra.mxu0 0.0
          %352 = vmatprep.subr.mxu0 0.0
          %353 = vmatpush1.msra.mxu0 0.0
          %354 = vmatprep.subr.mxu0 0.0
          %355 = vmatpush1.msra.mxu0 0.0
          %356 = vmatprep.subr.mxu0 0.0
          %357 = vmatpush1.msra.mxu0 %v325
          %358 = vmatprep.subr.mxu0 0.0
          %359 = vmatpush1.msra.mxu0 %v324
          %360 = vmatprep.subr.mxu0 0.0
          %361 = vmatpush1.msra.mxu0 %v323
          %362 = vmatprep.subr.mxu0 0.0
          %363 = vmatpush2.msra.mxu0 0.0
          %364 = vmatprep.subr.mxu0 0.0
          %365 = vmatpush2.msra.mxu0 0.0
          %366 = vmatprep.subr.mxu0 0.0
          %367 = vmatpush2.msra.mxu0 0.0
          %368 = vmatprep.subr.mxu0 0.0
          %369 = vmatpush2.msra.mxu0 0.0
          %370 = vmatprep.subr.mxu0 0.0
          %371 = vmatpush2.msra.mxu0 0.0
          %372 = vmatprep.subr.mxu0 0.0
          %373 = vmatpush2.msra.mxu0 0.0
          %374 = vmatprep.subr.mxu0 0.0
          %375 = vmatpush2.msra.mxu0 0.0
          %376 = vmatprep.subr.mxu0 0.0
          %377 = vmatpush2.msra.mxu0 0.0
          %378 = vmatprep.subr.mxu0 0.0
          %379 = vmatpush2.msra.mxu0 0.0
          %380 = vmatprep.subr.mxu0 0.0
          %381 = vmatpush2.msra.mxu0 0.0
          %382 = vmatprep.subr.mxu0 0.0
          %383 = vmatpush2.msra.mxu0 0.0
          %384 = vmatprep.subr.mxu0 0.0
          %385 = vmatpush2.msra.mxu0 0.0
          %386 = vmatprep.subr.mxu0 0.0
          %387 = vmatpush2.msra.mxu0 0.0
          %388 = vmatprep.subr.mxu0 0.0
          %389 = vmatpush2.msra.mxu0 0.0
          %390 = vmatprep.subr.mxu0 0.0
          %391 = vmatpush2.msra.mxu0 0.0
          %392 = vmatprep.subr.mxu0 0.0
          %393 = vmatpush2.msra.mxu0 0.0
          %394 = vmatprep.mubr.f32.mxu0 0.0
          %395 = vmatmul.mubr.f32.gmra.mxu0 %v328
          %v396 = vpop.f32.mrf.mxu0
          %v397 = vadd.f32 0.0, %v396
          %v398 = vpop.f32.mrf.mxu0
          %399 = vdwg.mxu0
          %vm400 = vcmask 261120
          %401 = vst.msk [vmem:[#allocation2] sm:$0xff] %vm400, %v397
          %403 = vrot.lane.b32.xlu0 %v397, 96
          %v404 = vpop.permute.xlu0 %403
          %406 = vst.msk [vmem:[#allocation3] sm:$0xff] %vm400, %v404
        $region56: #{tpu_custom_call.1} parent=35 // pred_fallthru
          _
        %v407 = vld [vmem:[%s267] sm:$0xff]
        %v408 = vld [vmem:[#allocation9] sm:$0xff]
        %v409 = vld [vmem:[#allocation9 + $0x8] sm:$0xff]
        %v410 = vld [vmem:[#allocation9 + $0x10] sm:$0xff]
        %v411 = vld [vmem:[#allocation9 + $0x18] sm:$0xff]
        %vm412 = vcmask 261120
        %v414 = vsel %vm412, %v407, 0
        %416 = vmatprep.subr.mxu0 0.0
        %417 = vmatpush1.msra.mxu0 0.0
        %418 = vmatprep.subr.mxu0 0.0
        %419 = vmatpush1.msra.mxu0 0.0
        %420 = vmatprep.subr.mxu0 0.0
        %421 = vmatpush1.msra.mxu0 0.0
        %422 = vmatprep.subr.mxu0 0.0
        %423 = vmatpush1.msra.mxu0 0.0
        %424 = vmatprep.subr.mxu0 0.0
        %425 = vmatpush1.msra.mxu0 0.0
        %426 = vmatprep.subr.mxu0 0.0
        %427 = vmatpush1.msra.mxu0 0.0
        %428 = vmatprep.subr.mxu0 0.0
        %429 = vmatpush1.msra.mxu0 0.0
        %430 = vmatprep.subr.mxu0 0.0
        %431 = vmatpush1.msra.mxu0 0.0
        %432 = vmatprep.subr.mxu0 0.0
        %433 = vmatpush1.msra.mxu0 0.0
        %434 = vmatprep.subr.mxu0 0.0
        %435 = vmatpush1.msra.mxu0 0.0
        %436 = vmatprep.subr.mxu0 0.0
        %437 = vmatpush1.msra.mxu0 0.0
        %438 = vmatprep.subr.mxu0 0.0
        %439 = vmatpush1.msra.mxu0 0.0
        %440 = vmatprep.subr.mxu0 0.0
        %441 = vmatpush1.msra.mxu0 %v411
        %442 = vmatprep.subr.mxu0 0.0
        %443 = vmatpush1.msra.mxu0 %v410
        %444 = vmatprep.subr.mxu0 0.0
        %445 = vmatpush1.msra.mxu0 %v409
        %446 = vmatprep.subr.mxu0 0.0
        %447 = vmatpush1.msra.mxu0 %v408
        %448 = vmatprep.subr.mxu0 0.0
        %449 = vmatpush2.msra.mxu0 0.0
        %450 = vmatprep.subr.mxu0 0.0
        %451 = vmatpush2.msra.mxu0 0.0
        %452 = vmatprep.subr.mxu0 0.0
        %453 = vmatpush2.msra.mxu0 0.0
        %454 = vmatprep.subr.mxu0 0.0
        %455 = vmatpush2.msra.mxu0 0.0
        %456 = vmatprep.subr.mxu0 0.0
        %457 = vmatpush2.msra.mxu0 0.0
        %458 = vmatprep.subr.mxu0 0.0
        %459 = vmatpush2.msra.mxu0 0.0
        %460 = vmatprep.subr.mxu0 0.0
        %461 = vmatpush2.msra.mxu0 0.0
        %462 = vmatprep.subr.mxu0 0.0
        %463 = vmatpush2.msra.mxu0 0.0
        %464 = vmatprep.subr.mxu0 0.0
        %465 = vmatpush2.msra.mxu0 0.0
        %466 = vmatprep.subr.mxu0 0.0
        %467 = vmatpush2.msra.mxu0 0.0
        %468 = vmatprep.subr.mxu0 0.0
        %469 = vmatpush2.msra.mxu0 0.0
        %470 = vmatprep.subr.mxu0 0.0
        %471 = vmatpush2.msra.mxu0 0.0
        %472 = vmatprep.subr.mxu0 0.0
        %473 = vmatpush2.msra.mxu0 0.0
        %474 = vmatprep.subr.mxu0 0.0
        %475 = vmatpush2.msra.mxu0 0.0
        %476 = vmatprep.subr.mxu0 0.0
        %477 = vmatpush2.msra.mxu0 0.0
        %478 = vmatprep.subr.mxu0 0.0
        %479 = vmatpush2.msra.mxu0 0.0
        %480 = vmatprep.mubr.f32.mxu0 0.0
        %481 = vmatmul.mubr.f32.gmra.mxu0 %v414
        %v482 = vpop.f32.mrf.mxu0
        %v483 = vadd.f32 0.0, %v482
        %v484 = vpop.f32.mrf.mxu0
        %485 = vdwg.mxu0
        %v486 = vmul.f32 %v483, 0.5
        %v487 = vld [vmem:[#allocation2] sm:$0xff]
        %v488 = vld [vmem:[#allocation3] sm:$0xff]
        %vm489 = vcmask 31744
        %v491 = vsel %vm489, %v486, 0
        %v494 = vsel %vm489, %v487, 0
        %496 = vmatprep.subr.mxu0 0.0
        %497 = vmatpush1.xpose.msra.mxu0 0.0
        %498 = vmatprep.subr.mxu0 0.0
        %499 = vmatpush1.xpose.msra.mxu0 0.0
        %500 = vmatprep.subr.mxu0 0.0
        %501 = vmatpush1.xpose.msra.mxu0 0.0
        %502 = vmatprep.subr.mxu0 0.0
        %503 = vmatpush1.xpose.msra.mxu0 0.0
        %504 = vmatprep.subr.mxu0 0.0
        %505 = vmatpush1.xpose.msra.mxu0 0.0
        %506 = vmatprep.subr.mxu0 0.0
        %507 = vmatpush1.xpose.msra.mxu0 0.0
        %508 = vmatprep.subr.mxu0 0.0
        %509 = vmatpush1.xpose.msra.mxu0 0.0
        %510 = vmatprep.subr.mxu0 0.0
        %511 = vmatpush1.xpose.msra.mxu0 0.0
        %512 = vmatprep.subr.mxu0 0.0
        %513 = vmatpush1.xpose.msra.mxu0 0.0
        %514 = vmatprep.subr.mxu0 0.0
        %515 = vmatpush1.xpose.msra.mxu0 0.0
        %516 = vmatprep.subr.mxu0 0.0
        %517 = vmatpush1.xpose.msra.mxu0 0.0
        %518 = vmatprep.subr.mxu0 0.0
        %519 = vmatpush1.xpose.msra.mxu0 0.0
        %520 = vmatprep.subr.mxu0 0.0
        %521 = vmatpush1.xpose.msra.mxu0 0.0
        %522 = vmatprep.subr.mxu0 0.0
        %523 = vmatpush1.xpose.msra.mxu0 0.0
        %524 = vmatprep.subr.mxu0 0.0
        %525 = vmatpush1.xpose.msra.mxu0 0.0
        %526 = vmatprep.subr.mxu0 0.0
        %527 = vmatpush1.xpose.msra.mxu0 %v494
        %528 = vmatprep.subr.mxu0 0.0
        %529 = vmatpush2.xpose.msra.mxu0 0.0
        %530 = vmatprep.subr.mxu0 0.0
        %531 = vmatpush2.xpose.msra.mxu0 0.0
        %532 = vmatprep.subr.mxu0 0.0
        %533 = vmatpush2.xpose.msra.mxu0 0.0
        %534 = vmatprep.subr.mxu0 0.0
        %535 = vmatpush2.xpose.msra.mxu0 0.0
        %536 = vmatprep.subr.mxu0 0.0
        %537 = vmatpush2.xpose.msra.mxu0 0.0
        %538 = vmatprep.subr.mxu0 0.0
        %539 = vmatpush2.xpose.msra.mxu0 0.0
        %540 = vmatprep.subr.mxu0 0.0
        %541 = vmatpush2.xpose.msra.mxu0 0.0
        %542 = vmatprep.subr.mxu0 0.0
        %543 = vmatpush2.xpose.msra.mxu0 0.0
        %544 = vmatprep.subr.mxu0 0.0
        %545 = vmatpush2.xpose.msra.mxu0 0.0
        %546 = vmatprep.subr.mxu0 0.0
        %547 = vmatpush2.xpose.msra.mxu0 0.0
        %548 = vmatprep.subr.mxu0 0.0
        %549 = vmatpush2.xpose.msra.mxu0 0.0
        %550 = vmatprep.subr.mxu0 0.0
        %551 = vmatpush2.xpose.msra.mxu0 0.0
        %552 = vmatprep.subr.mxu0 0.0
        %553 = vmatpush2.xpose.msra.mxu0 0.0
        %554 = vmatprep.subr.mxu0 0.0
        %555 = vmatpush2.xpose.msra.mxu0 0.0
        %556 = vmatprep.subr.mxu0 0.0
        %557 = vmatpush2.xpose.msra.mxu0 0.0
        %558 = vmatprep.subr.mxu0 0.0
        %559 = vmatpush2.xpose.msra.mxu0 0.0
        %560 = vmatprep.mubr.f32.mxu0 0.0
        %561 = vmatmul.mubr.f32.gmra.mxu0 %v491
        %v562 = vpop.f32.mrf.mxu0
        %v563 = vadd.f32 0.0, %v562
        %v564 = vpop.f32.mrf.mxu0
        %565 = vdwg.mxu0
        %vm566 = vcmask 64512
        %v567 = vsel %vm566, %v563, -inf
        %568 = vmax.xlane.f32.xlu0 %v567
        %v569 = vpop.xlane.xlu0 %568
        %v570 = vsub.f32 %v563, %v569
        %v571 = vmul.f32 %v570, 1.442695
        %v572 = vpow.pop %v571
        %v573 = vsel %vm566, %v572, 0.0
        %574 = vadd.xlane.f32.xlu0 %v573
        %v575 = vpop.xlane.xlu0 %574
        %v576 = vrcp.pop %v575
        %v577 = vmul.f32 %v572, %v576
        %v579 = vsel %vm566, %v577, 0
        %581 = vmatprep.subr.mxu0 0.0
        %582 = vmatpush1.msra.mxu0 0.0
        %583 = vmatprep.subr.mxu0 0.0
        %584 = vmatpush1.msra.mxu0 0.0
        %585 = vmatprep.subr.mxu0 0.0
        %586 = vmatpush1.msra.mxu0 0.0
        %587 = vmatprep.subr.mxu0 0.0
        %588 = vmatpush1.msra.mxu0 0.0
        %589 = vmatprep.subr.mxu0 0.0
        %590 = vmatpush1.msra.mxu0 0.0
        %591 = vmatprep.subr.mxu0 0.0
        %592 = vmatpush1.msra.mxu0 0.0
        %593 = vmatprep.subr.mxu0 0.0
        %594 = vmatpush1.msra.mxu0 0.0
        %595 = vmatprep.subr.mxu0 0.0
        %596 = vmatpush1.msra.mxu0 0.0
        %597 = vmatprep.subr.mxu0 0.0
        %598 = vmatpush1.msra.mxu0 0.0
        %599 = vmatprep.subr.mxu0 0.0
        %600 = vmatpush1.msra.mxu0 0.0
        %601 = vmatprep.subr.mxu0 0.0
        %602 = vmatpush1.msra.mxu0 0.0
        %603 = vmatprep.subr.mxu0 0.0
        %604 = vmatpush1.msra.mxu0 0.0
        %605 = vmatprep.subr.mxu0 0.0
        %606 = vmatpush1.msra.mxu0 0.0
        %607 = vmatprep.subr.mxu0 0.0
        %608 = vmatpush1.msra.mxu0 0.0
        %609 = vmatprep.subr.mxu0 0.0
        %610 = vmatpush1.msra.mxu0 0.0
        %611 = vmatprep.subr.mxu0 0.0
        %612 = vmatpush1.msra.mxu0 %v488
        %613 = vmatprep.subr.mxu0 0.0
        %614 = vmatpush2.msra.mxu0 0.0
        %615 = vmatprep.subr.mxu0 0.0
        %616 = vmatpush2.msra.mxu0 0.0
        %617 = vmatprep.subr.mxu0 0.0
        %618 = vmatpush2.msra.mxu0 0.0
        %619 = vmatprep.subr.mxu0 0.0
        %620 = vmatpush2.msra.mxu0 0.0
        %621 = vmatprep.subr.mxu0 0.0
        %622 = vmatpush2.msra.mxu0 0.0
        %623 = vmatprep.subr.mxu0 0.0
        %624 = vmatpush2.msra.mxu0 0.0
        %625 = vmatprep.subr.mxu0 0.0
        %626 = vmatpush2.msra.mxu0 0.0
        %627 = vmatprep.subr.mxu0 0.0
        %628 = vmatpush2.msra.mxu0 0.0
        %629 = vmatprep.subr.mxu0 0.0
        %630 = vmatpush2.msra.mxu0 0.0
        %631 = vmatprep.subr.mxu0 0.0
        %632 = vmatpush2.msra.mxu0 0.0
        %633 = vmatprep.subr.mxu0 0.0
        %634 = vmatpush2.msra.mxu0 0.0
        %635 = vmatprep.subr.mxu0 0.0
        %636 = vmatpush2.msra.mxu0 0.0
        %637 = vmatprep.subr.mxu0 0.0
        %638 = vmatpush2.msra.mxu0 0.0
        %639 = vmatprep.subr.mxu0 0.0
        %640 = vmatpush2.msra.mxu0 0.0
        %641 = vmatprep.subr.mxu0 0.0
        %642 = vmatpush2.msra.mxu0 0.0
        %643 = vmatprep.subr.mxu0 0.0
        %644 = vmatpush2.msra.mxu0 0.0
        %645 = vmatprep.mubr.f32.mxu0 0.0
        %646 = vmatmul.mubr.f32.gmra.mxu0 %v579
        %v647 = vpop.f32.mrf.mxu0
        %v648 = vadd.f32 0.0, %v647
        %v649 = vpop.f32.mrf.mxu0
        %650 = vdwg.mxu0
        %651 = vrot.lane.b32.xlu0 %v486, 124
        %v652 = vpop.permute.xlu0 %651
        %653 = vrot.lane.b32.xlu0 %v487, 124
        %v654 = vpop.permute.xlu0 %653
        %v655 = vsel %vm489, %v652, 0
        %v657 = vsel %vm489, %v654, 0
        %659 = vmatprep.subr.mxu0 0.0
        %660 = vmatpush1.xpose.msra.mxu0 0.0
        %661 = vmatprep.subr.mxu0 0.0
        %662 = vmatpush1.xpose.msra.mxu0 0.0
        %663 = vmatprep.subr.mxu0 0.0
        %664 = vmatpush1.xpose.msra.mxu0 0.0
        %665 = vmatprep.subr.mxu0 0.0
        %666 = vmatpush1.xpose.msra.mxu0 0.0
        %667 = vmatprep.subr.mxu0 0.0
        %668 = vmatpush1.xpose.msra.mxu0 0.0
        %669 = vmatprep.subr.mxu0 0.0
        %670 = vmatpush1.xpose.msra.mxu0 0.0
        %671 = vmatprep.subr.mxu0 0.0
        %672 = vmatpush1.xpose.msra.mxu0 0.0
        %673 = vmatprep.subr.mxu0 0.0
        %674 = vmatpush1.xpose.msra.mxu0 0.0
        %675 = vmatprep.subr.mxu0 0.0
        %676 = vmatpush1.xpose.msra.mxu0 0.0
        %677 = vmatprep.subr.mxu0 0.0
        %678 = vmatpush1.xpose.msra.mxu0 0.0
        %679 = vmatprep.subr.mxu0 0.0
        %680 = vmatpush1.xpose.msra.mxu0 0.0
        %681 = vmatprep.subr.mxu0 0.0
        %682 = vmatpush1.xpose.msra.mxu0 0.0
        %683 = vmatprep.subr.mxu0 0.0
        %684 = vmatpush1.xpose.msra.mxu0 0.0
        %685 = vmatprep.subr.mxu0 0.0
        %686 = vmatpush1.xpose.msra.mxu0 0.0
        %687 = vmatprep.subr.mxu0 0.0
        %688 = vmatpush1.xpose.msra.mxu0 0.0
        %689 = vmatprep.subr.mxu0 0.0
        %690 = vmatpush1.xpose.msra.mxu0 %v657
        %691 = vmatprep.subr.mxu0 0.0
        %692 = vmatpush2.xpose.msra.mxu0 0.0
        %693 = vmatprep.subr.mxu0 0.0
        %694 = vmatpush2.xpose.msra.mxu0 0.0
        %695 = vmatprep.subr.mxu0 0.0
        %696 = vmatpush2.xpose.msra.mxu0 0.0
        %697 = vmatprep.subr.mxu0 0.0
        %698 = vmatpush2.xpose.msra.mxu0 0.0
        %699 = vmatprep.subr.mxu0 0.0
        %700 = vmatpush2.xpose.msra.mxu0 0.0
        %701 = vmatprep.subr.mxu0 0.0
        %702 = vmatpush2.xpose.msra.mxu0 0.0
        %703 = vmatprep.subr.mxu0 0.0
        %704 = vmatpush2.xpose.msra.mxu0 0.0
        %705 = vmatprep.subr.mxu0 0.0
        %706 = vmatpush2.xpose.msra.mxu0 0.0
        %707 = vmatprep.subr.mxu0 0.0
        %708 = vmatpush2.xpose.msra.mxu0 0.0
        %709 = vmatprep.subr.mxu0 0.0
        %710 = vmatpush2.xpose.msra.mxu0 0.0
        %711 = vmatprep.subr.mxu0 0.0
        %712 = vmatpush2.xpose.msra.mxu0 0.0
        %713 = vmatprep.subr.mxu0 0.0
        %714 = vmatpush2.xpose.msra.mxu0 0.0
        %715 = vmatprep.subr.mxu0 0.0
        %716 = vmatpush2.xpose.msra.mxu0 0.0
        %717 = vmatprep.subr.mxu0 0.0
        %718 = vmatpush2.xpose.msra.mxu0 0.0
        %719 = vmatprep.subr.mxu0 0.0
        %720 = vmatpush2.xpose.msra.mxu0 0.0
        %721 = vmatprep.subr.mxu0 0.0
        %722 = vmatpush2.xpose.msra.mxu0 0.0
        %723 = vmatprep.mubr.f32.mxu0 0.0
        %724 = vmatmul.mubr.f32.gmra.mxu0 %v655
        %v725 = vpop.f32.mrf.mxu0
        %v726 = vadd.f32 0.0, %v725
        %v727 = vpop.f32.mrf.mxu0
        %728 = vdwg.mxu0
        %v729 = vsel %vm566, %v726, -inf
        %730 = vmax.xlane.f32.xlu0 %v729
        %v731 = vpop.xlane.xlu0 %730
        %v732 = vsub.f32 %v726, %v731
        %v733 = vmul.f32 %v732, 1.442695
        %v734 = vpow.pop %v733
        %v735 = vsel %vm566, %v734, 0.0
        %736 = vadd.xlane.f32.xlu0 %v735
        %v737 = vpop.xlane.xlu0 %736
        %v738 = vrcp.pop %v737
        %v739 = vmul.f32 %v734, %v738
        %741 = vrot.lane.b32.xlu0 %v488, 124
        %v742 = vpop.permute.xlu0 %741
        %v745 = vsel %vm566, %v739, 0
        %747 = vmatprep.subr.mxu0 0.0
        %748 = vmatpush1.msra.mxu0 0.0
        %749 = vmatprep.subr.mxu0 0.0
        %750 = vmatpush1.msra.mxu0 0.0
        %751 = vmatprep.subr.mxu0 0.0
        %752 = vmatpush1.msra.mxu0 0.0
        %753 = vmatprep.subr.mxu0 0.0
        %754 = vmatpush1.msra.mxu0 0.0
        %755 = vmatprep.subr.mxu0 0.0
        %756 = vmatpush1.msra.mxu0 0.0
        %757 = vmatprep.subr.mxu0 0.0
        %758 = vmatpush1.msra.mxu0 0.0
        %759 = vmatprep.subr.mxu0 0.0
        %760 = vmatpush1.msra.mxu0 0.0
        %761 = vmatprep.subr.mxu0 0.0
        %762 = vmatpush1.msra.mxu0 0.0
        %763 = vmatprep.subr.mxu0 0.0
        %764 = vmatpush1.msra.mxu0 0.0
        %765 = vmatprep.subr.mxu0 0.0
        %766 = vmatpush1.msra.mxu0 0.0
        %767 = vmatprep.subr.mxu0 0.0
        %768 = vmatpush1.msra.mxu0 0.0
        %769 = vmatprep.subr.mxu0 0.0
        %770 = vmatpush1.msra.mxu0 0.0
        %771 = vmatprep.subr.mxu0 0.0
        %772 = vmatpush1.msra.mxu0 0.0
        %773 = vmatprep.subr.mxu0 0.0
        %774 = vmatpush1.msra.mxu0 0.0
        %775 = vmatprep.subr.mxu0 0.0
        %776 = vmatpush1.msra.mxu0 0.0
        %777 = vmatprep.subr.mxu0 0.0
        %778 = vmatpush1.msra.mxu0 %v742
        %779 = vmatprep.subr.mxu0 0.0
        %780 = vmatpush2.msra.mxu0 0.0
        %781 = vmatprep.subr.mxu0 0.0
        %782 = vmatpush2.msra.mxu0 0.0
        %783 = vmatprep.subr.mxu0 0.0
        %784 = vmatpush2.msra.mxu0 0.0
        %785 = vmatprep.subr.mxu0 0.0
        %786 = vmatpush2.msra.mxu0 0.0
        %787 = vmatprep.subr.mxu0 0.0
        %788 = vmatpush2.msra.mxu0 0.0
        %789 = vmatprep.subr.mxu0 0.0
        %790 = vmatpush2.msra.mxu0 0.0
        %791 = vmatprep.subr.mxu0 0.0
        %792 = vmatpush2.msra.mxu0 0.0
        %793 = vmatprep.subr.mxu0 0.0
        %794 = vmatpush2.msra.mxu0 0.0
        %795 = vmatprep.subr.mxu0 0.0
        %796 = vmatpush2.msra.mxu0 0.0
        %797 = vmatprep.subr.mxu0 0.0
        %798 = vmatpush2.msra.mxu0 0.0
        %799 = vmatprep.subr.mxu0 0.0
        %800 = vmatpush2.msra.mxu0 0.0
        %801 = vmatprep.subr.mxu0 0.0
        %802 = vmatpush2.msra.mxu0 0.0
        %803 = vmatprep.subr.mxu0 0.0
        %804 = vmatpush2.msra.mxu0 0.0
        %805 = vmatprep.subr.mxu0 0.0
        %806 = vmatpush2.msra.mxu0 0.0
        %807 = vmatprep.subr.mxu0 0.0
        %808 = vmatpush2.msra.mxu0 0.0
        %809 = vmatprep.subr.mxu0 0.0
        %810 = vmatpush2.msra.mxu0 0.0
        %811 = vmatprep.mubr.f32.mxu0 0.0
        %812 = vmatmul.mubr.f32.gmra.mxu0 %v745
        %v813 = vpop.f32.mrf.mxu0
        %v814 = vadd.f32 0.0, %v813
        %v815 = vpop.f32.mrf.mxu0
        %816 = vdwg.mxu0
        %817 = vrot.lane.b32.xlu0 %v486, 120
        %v818 = vpop.permute.xlu0 %817
        %819 = vrot.lane.b32.xlu0 %v487, 120
        %v820 = vpop.permute.xlu0 %819
        %v821 = vsel %vm489, %v818, 0
        %v823 = vsel %vm489, %v820, 0
        %825 = vmatprep.subr.mxu0 0.0
        %826 = vmatpush1.xpose.msra.mxu0 0.0
        %827 = vmatprep.subr.mxu0 0.0
        %828 = vmatpush1.xpose.msra.mxu0 0.0
        %829 = vmatprep.subr.mxu0 0.0
        %830 = vmatpush1.xpose.msra.mxu0 0.0
        %831 = vmatprep.subr.mxu0 0.0
        %832 = vmatpush1.xpose.msra.mxu0 0.0
        %833 = vmatprep.subr.mxu0 0.0
        %834 = vmatpush1.xpose.msra.mxu0 0.0
        %835 = vmatprep.subr.mxu0 0.0
        %836 = vmatpush1.xpose.msra.mxu0 0.0
        %837 = vmatprep.subr.mxu0 0.0
        %838 = vmatpush1.xpose.msra.mxu0 0.0
        %839 = vmatprep.subr.mxu0 0.0
        %840 = vmatpush1.xpose.msra.mxu0 0.0
        %841 = vmatprep.subr.mxu0 0.0
        %842 = vmatpush1.xpose.msra.mxu0 0.0
        %843 = vmatprep.subr.mxu0 0.0
        %844 = vmatpush1.xpose.msra.mxu0 0.0
        %845 = vmatprep.subr.mxu0 0.0
        %846 = vmatpush1.xpose.msra.mxu0 0.0
        %847 = vmatprep.subr.mxu0 0.0
        %848 = vmatpush1.xpose.msra.mxu0 0.0
        %849 = vmatprep.subr.mxu0 0.0
        %850 = vmatpush1.xpose.msra.mxu0 0.0
        %851 = vmatprep.subr.mxu0 0.0
        %852 = vmatpush1.xpose.msra.mxu0 0.0
        %853 = vmatprep.subr.mxu0 0.0
        %854 = vmatpush1.xpose.msra.mxu0 0.0
        %855 = vmatprep.subr.mxu0 0.0
        %856 = vmatpush1.xpose.msra.mxu0 %v823
        %857 = vmatprep.subr.mxu0 0.0
        %858 = vmatpush2.xpose.msra.mxu0 0.0
        %859 = vmatprep.subr.mxu0 0.0
        %860 = vmatpush2.xpose.msra.mxu0 0.0
        %861 = vmatprep.subr.mxu0 0.0
        %862 = vmatpush2.xpose.msra.mxu0 0.0
        %863 = vmatprep.subr.mxu0 0.0
        %864 = vmatpush2.xpose.msra.mxu0 0.0
        %865 = vmatprep.subr.mxu0 0.0
        %866 = vmatpush2.xpose.msra.mxu0 0.0
        %867 = vmatprep.subr.mxu0 0.0
        %868 = vmatpush2.xpose.msra.mxu0 0.0
        %869 = vmatprep.subr.mxu0 0.0
        %870 = vmatpush2.xpose.msra.mxu0 0.0
        %871 = vmatprep.subr.mxu0 0.0
        %872 = vmatpush2.xpose.msra.mxu0 0.0
        %873 = vmatprep.subr.mxu0 0.0
        %874 = vmatpush2.xpose.msra.mxu0 0.0
        %875 = vmatprep.subr.mxu0 0.0
        %876 = vmatpush2.xpose.msra.mxu0 0.0
        %877 = vmatprep.subr.mxu0 0.0
        %878 = vmatpush2.xpose.msra.mxu0 0.0
        %879 = vmatprep.subr.mxu0 0.0
        %880 = vmatpush2.xpose.msra.mxu0 0.0
        %881 = vmatprep.subr.mxu0 0.0
        %882 = vmatpush2.xpose.msra.mxu0 0.0
        %883 = vmatprep.subr.mxu0 0.0
        %884 = vmatpush2.xpose.msra.mxu0 0.0
        %885 = vmatprep.subr.mxu0 0.0
        %886 = vmatpush2.xpose.msra.mxu0 0.0
        %887 = vmatprep.subr.mxu0 0.0
        %888 = vmatpush2.xpose.msra.mxu0 0.0
        %889 = vmatprep.mubr.f32.mxu0 0.0
        %890 = vmatmul.mubr.f32.gmra.mxu0 %v821
        %v891 = vpop.f32.mrf.mxu0
        %v892 = vadd.f32 0.0, %v891
        %v893 = vpop.f32.mrf.mxu0
        %894 = vdwg.mxu0
        %v895 = vsel %vm566, %v892, -inf
        %896 = vmax.xlane.f32.xlu0 %v895
        %v897 = vpop.xlane.xlu0 %896
        %v898 = vsub.f32 %v892, %v897
        %v899 = vmul.f32 %v898, 1.442695
        %v900 = vpow.pop %v899
        %v901 = vsel %vm566, %v900, 0.0
        %902 = vadd.xlane.f32.xlu0 %v901
        %v903 = vpop.xlane.xlu0 %902
        %v904 = vrcp.pop %v903
        %v905 = vmul.f32 %v900, %v904
        %906 = vrot.lane.b32.xlu0 %v488, 120
        %v907 = vpop.permute.xlu0 %906
        %v910 = vsel %vm566, %v905, 0
        %912 = vmatprep.subr.mxu0 0.0
        %913 = vmatpush1.msra.mxu0 0.0
        %914 = vmatprep.subr.mxu0 0.0
        %915 = vmatpush1.msra.mxu0 0.0
        %916 = vmatprep.subr.mxu0 0.0
        %917 = vmatpush1.msra.mxu0 0.0
        %918 = vmatprep.subr.mxu0 0.0
        %919 = vmatpush1.msra.mxu0 0.0
        %920 = vmatprep.subr.mxu0 0.0
        %921 = vmatpush1.msra.mxu0 0.0
        %922 = vmatprep.subr.mxu0 0.0
        %923 = vmatpush1.msra.mxu0 0.0
        %924 = vmatprep.subr.mxu0 0.0
        %925 = vmatpush1.msra.mxu0 0.0
        %926 = vmatprep.subr.mxu0 0.0
        %927 = vmatpush1.msra.mxu0 0.0
        %928 = vmatprep.subr.mxu0 0.0
        %929 = vmatpush1.msra.mxu0 0.0
        %930 = vmatprep.subr.mxu0 0.0
        %931 = vmatpush1.msra.mxu0 0.0
        %932 = vmatprep.subr.mxu0 0.0
        %933 = vmatpush1.msra.mxu0 0.0
        %934 = vmatprep.subr.mxu0 0.0
        %935 = vmatpush1.msra.mxu0 0.0
        %936 = vmatprep.subr.mxu0 0.0
        %937 = vmatpush1.msra.mxu0 0.0
        %938 = vmatprep.subr.mxu0 0.0
        %939 = vmatpush1.msra.mxu0 0.0
        %940 = vmatprep.subr.mxu0 0.0
        %941 = vmatpush1.msra.mxu0 0.0
        %942 = vmatprep.subr.mxu0 0.0
        %943 = vmatpush1.msra.mxu0 %v907
        %944 = vmatprep.subr.mxu0 0.0
        %945 = vmatpush2.msra.mxu0 0.0
        %946 = vmatprep.subr.mxu0 0.0
        %947 = vmatpush2.msra.mxu0 0.0
        %948 = vmatprep.subr.mxu0 0.0
        %949 = vmatpush2.msra.mxu0 0.0
        %950 = vmatprep.subr.mxu0 0.0
        %951 = vmatpush2.msra.mxu0 0.0
        %952 = vmatprep.subr.mxu0 0.0
        %953 = vmatpush2.msra.mxu0 0.0
        %954 = vmatprep.subr.mxu0 0.0
        %955 = vmatpush2.msra.mxu0 0.0
        %956 = vmatprep.subr.mxu0 0.0
        %957 = vmatpush2.msra.mxu0 0.0
        %958 = vmatprep.subr.mxu0 0.0
        %959 = vmatpush2.msra.mxu0 0.0
        %960 = vmatprep.subr.mxu0 0.0
        %961 = vmatpush2.msra.mxu0 0.0
        %962 = vmatprep.subr.mxu0 0.0
        %963 = vmatpush2.msra.mxu0 0.0
        %964 = vmatprep.subr.mxu0 0.0
        %965 = vmatpush2.msra.mxu0 0.0
        %966 = vmatprep.subr.mxu0 0.0
        %967 = vmatpush2.msra.mxu0 0.0
        %968 = vmatprep.subr.mxu0 0.0
        %969 = vmatpush2.msra.mxu0 0.0
        %970 = vmatprep.subr.mxu0 0.0
        %971 = vmatpush2.msra.mxu0 0.0
        %972 = vmatprep.subr.mxu0 0.0
        %973 = vmatpush2.msra.mxu0 0.0
        %974 = vmatprep.subr.mxu0 0.0
        %975 = vmatpush2.msra.mxu0 0.0
        %976 = vmatprep.mubr.f32.mxu0 0.0
        %977 = vmatmul.mubr.f32.gmra.mxu0 %v910
        %v978 = vpop.f32.mrf.mxu0
        %v979 = vadd.f32 0.0, %v978
        %v980 = vpop.f32.mrf.mxu0
        %981 = vdwg.mxu0
        %982 = vrot.lane.b32.xlu0 %v486, 116
        %v983 = vpop.permute.xlu0 %982
        %984 = vrot.lane.b32.xlu0 %v487, 116
        %v985 = vpop.permute.xlu0 %984
        %v986 = vsel %vm489, %v983, 0
        %v988 = vsel %vm489, %v985, 0
        %990 = vmatprep.subr.mxu0 0.0
        %991 = vmatpush1.xpose.msra.mxu0 0.0
        %992 = vmatprep.subr.mxu0 0.0
        %993 = vmatpush1.xpose.msra.mxu0 0.0
        %994 = vmatprep.subr.mxu0 0.0
        %995 = vmatpush1.xpose.msra.mxu0 0.0
        %996 = vmatprep.subr.mxu0 0.0
        %997 = vmatpush1.xpose.msra.mxu0 0.0
        %998 = vmatprep.subr.mxu0 0.0
        %999 = vmatpush1.xpose.msra.mxu0 0.0
        %1000 = vmatprep.subr.mxu0 0.0
        %1001 = vmatpush1.xpose.msra.mxu0 0.0
        %1002 = vmatprep.subr.mxu0 0.0
        %1003 = vmatpush1.xpose.msra.mxu0 0.0
        %1004 = vmatprep.subr.mxu0 0.0
        %1005 = vmatpush1.xpose.msra.mxu0 0.0
        %1006 = vmatprep.subr.mxu0 0.0
        %1007 = vmatpush1.xpose.msra.mxu0 0.0
        %1008 = vmatprep.subr.mxu0 0.0
        %1009 = vmatpush1.xpose.msra.mxu0 0.0
        %1010 = vmatprep.subr.mxu0 0.0
        %1011 = vmatpush1.xpose.msra.mxu0 0.0
        %1012 = vmatprep.subr.mxu0 0.0
        %1013 = vmatpush1.xpose.msra.mxu0 0.0
        %1014 = vmatprep.subr.mxu0 0.0
        %1015 = vmatpush1.xpose.msra.mxu0 0.0
        %1016 = vmatprep.subr.mxu0 0.0
        %1017 = vmatpush1.xpose.msra.mxu0 0.0
        %1018 = vmatprep.subr.mxu0 0.0
        %1019 = vmatpush1.xpose.msra.mxu0 0.0
        %1020 = vmatprep.subr.mxu0 0.0
        %1021 = vmatpush1.xpose.msra.mxu0 %v988
        %1022 = vmatprep.subr.mxu0 0.0
        %1023 = vmatpush2.xpose.msra.mxu0 0.0
        %1024 = vmatprep.subr.mxu0 0.0
        %1025 = vmatpush2.xpose.msra.mxu0 0.0
        %1026 = vmatprep.subr.mxu0 0.0
        %1027 = vmatpush2.xpose.msra.mxu0 0.0
        %1028 = vmatprep.subr.mxu0 0.0
        %1029 = vmatpush2.xpose.msra.mxu0 0.0
        %1030 = vmatprep.subr.mxu0 0.0
        %1031 = vmatpush2.xpose.msra.mxu0 0.0
        %1032 = vmatprep.subr.mxu0 0.0
        %1033 = vmatpush2.xpose.msra.mxu0 0.0
        %1034 = vmatprep.subr.mxu0 0.0
        %1035 = vmatpush2.xpose.msra.mxu0 0.0
        %1036 = vmatprep.subr.mxu0 0.0
        %1037 = vmatpush2.xpose.msra.mxu0 0.0
        %1038 = vmatprep.subr.mxu0 0.0
        %1039 = vmatpush2.xpose.msra.mxu0 0.0
        %1040 = vmatprep.subr.mxu0 0.0
        %1041 = vmatpush2.xpose.msra.mxu0 0.0
        %1042 = vmatprep.subr.mxu0 0.0
        %1043 = vmatpush2.xpose.msra.mxu0 0.0
        %1044 = vmatprep.subr.mxu0 0.0
        %1045 = vmatpush2.xpose.msra.mxu0 0.0
        %1046 = vmatprep.subr.mxu0 0.0
        %1047 = vmatpush2.xpose.msra.mxu0 0.0
        %1048 = vmatprep.subr.mxu0 0.0
        %1049 = vmatpush2.xpose.msra.mxu0 0.0
        %1050 = vmatprep.subr.mxu0 0.0
        %1051 = vmatpush2.xpose.msra.mxu0 0.0
        %1052 = vmatprep.subr.mxu0 0.0
        %1053 = vmatpush2.xpose.msra.mxu0 0.0
        %1054 = vmatprep.mubr.f32.mxu0 0.0
        %1055 = vmatmul.mubr.f32.gmra.mxu0 %v986
        %v1056 = vpop.f32.mrf.mxu0
        %v1057 = vadd.f32 0.0, %v1056
        %v1058 = vpop.f32.mrf.mxu0
        %1059 = vdwg.mxu0
        %v1060 = vsel %vm566, %v1057, -inf
        %1061 = vmax.xlane.f32.xlu0 %v1060
        %v1062 = vpop.xlane.xlu0 %1061
        %v1063 = vsub.f32 %v1057, %v1062
        %v1064 = vmul.f32 %v1063, 1.442695
        %v1065 = vpow.pop %v1064
        %v1066 = vsel %vm566, %v1065, 0.0
        %1067 = vadd.xlane.f32.xlu0 %v1066
        %v1068 = vpop.xlane.xlu0 %1067
        %v1069 = vrcp.pop %v1068
        %v1070 = vmul.f32 %v1065, %v1069
        %1071 = vrot.lane.b32.xlu0 %v488, 116
        %v1072 = vpop.permute.xlu0 %1071
        %v1075 = vsel %vm566, %v1070, 0
        %1077 = vmatprep.subr.mxu0 0.0
        %1078 = vmatpush1.msra.mxu0 0.0
        %1079 = vmatprep.subr.mxu0 0.0
        %1080 = vmatpush1.msra.mxu0 0.0
        %1081 = vmatprep.subr.mxu0 0.0
        %1082 = vmatpush1.msra.mxu0 0.0
        %1083 = vmatprep.subr.mxu0 0.0
        %1084 = vmatpush1.msra.mxu0 0.0
        %1085 = vmatprep.subr.mxu0 0.0
        %1086 = vmatpush1.msra.mxu0 0.0
        %1087 = vmatprep.subr.mxu0 0.0
        %1088 = vmatpush1.msra.mxu0 0.0
        %1089 = vmatprep.subr.mxu0 0.0
        %1090 = vmatpush1.msra.mxu0 0.0
        %1091 = vmatprep.subr.mxu0 0.0
        %1092 = vmatpush1.msra.mxu0 0.0
        %1093 = vmatprep.subr.mxu0 0.0
        %1094 = vmatpush1.msra.mxu0 0.0
        %1095 = vmatprep.subr.mxu0 0.0
        %1096 = vmatpush1.msra.mxu0 0.0
        %1097 = vmatprep.subr.mxu0 0.0
        %1098 = vmatpush1.msra.mxu0 0.0
        %1099 = vmatprep.subr.mxu0 0.0
        %1100 = vmatpush1.msra.mxu0 0.0
        %1101 = vmatprep.subr.mxu0 0.0
        %1102 = vmatpush1.msra.mxu0 0.0
        %1103 = vmatprep.subr.mxu0 0.0
        %1104 = vmatpush1.msra.mxu0 0.0
        %1105 = vmatprep.subr.mxu0 0.0
        %1106 = vmatpush1.msra.mxu0 0.0
        %1107 = vmatprep.subr.mxu0 0.0
        %1108 = vmatpush1.msra.mxu0 %v1072
        %1109 = vmatprep.subr.mxu0 0.0
        %1110 = vmatpush2.msra.mxu0 0.0
        %1111 = vmatprep.subr.mxu0 0.0
        %1112 = vmatpush2.msra.mxu0 0.0
        %1113 = vmatprep.subr.mxu0 0.0
        %1114 = vmatpush2.msra.mxu0 0.0
        %1115 = vmatprep.subr.mxu0 0.0
        %1116 = vmatpush2.msra.mxu0 0.0
        %1117 = vmatprep.subr.mxu0 0.0
        %1118 = vmatpush2.msra.mxu0 0.0
        %1119 = vmatprep.subr.mxu0 0.0
        %1120 = vmatpush2.msra.mxu0 0.0
        %1121 = vmatprep.subr.mxu0 0.0
        %1122 = vmatpush2.msra.mxu0 0.0
        %1123 = vmatprep.subr.mxu0 0.0
        %1124 = vmatpush2.msra.mxu0 0.0
        %1125 = vmatprep.subr.mxu0 0.0
        %1126 = vmatpush2.msra.mxu0 0.0
        %1127 = vmatprep.subr.mxu0 0.0
        %1128 = vmatpush2.msra.mxu0 0.0
        %1129 = vmatprep.subr.mxu0 0.0
        %1130 = vmatpush2.msra.mxu0 0.0
        %1131 = vmatprep.subr.mxu0 0.0
        %1132 = vmatpush2.msra.mxu0 0.0
        %1133 = vmatprep.subr.mxu0 0.0
        %1134 = vmatpush2.msra.mxu0 0.0
        %1135 = vmatprep.subr.mxu0 0.0
        %1136 = vmatpush2.msra.mxu0 0.0
        %1137 = vmatprep.subr.mxu0 0.0
        %1138 = vmatpush2.msra.mxu0 0.0
        %1139 = vmatprep.subr.mxu0 0.0
        %1140 = vmatpush2.msra.mxu0 0.0
        %1141 = vmatprep.mubr.f32.mxu0 0.0
        %1142 = vmatmul.mubr.f32.gmra.mxu0 %v1075
        %v1143 = vpop.f32.mrf.mxu0
        %v1144 = vadd.f32 0.0, %v1143
        %v1145 = vpop.f32.mrf.mxu0
        %1146 = vdwg.mxu0
        %1147 = vrot.lane.b32.xlu0 %v486, 112
        %v1148 = vpop.permute.xlu0 %1147
        %1149 = vrot.lane.b32.xlu0 %v487, 112
        %v1150 = vpop.permute.xlu0 %1149
        %v1151 = vsel %vm489, %v1148, 0
        %v1153 = vsel %vm489, %v1150, 0
        %1155 = vmatprep.subr.mxu0 0.0
        %1156 = vmatpush1.xpose.msra.mxu0 0.0
        %1157 = vmatprep.subr.mxu0 0.0
        %1158 = vmatpush1.xpose.msra.mxu0 0.0
        %1159 = vmatprep.subr.mxu0 0.0
        %1160 = vmatpush1.xpose.msra.mxu0 0.0
        %1161 = vmatprep.subr.mxu0 0.0
        %1162 = vmatpush1.xpose.msra.mxu0 0.0
        %1163 = vmatprep.subr.mxu0 0.0
        %1164 = vmatpush1.xpose.msra.mxu0 0.0
        %1165 = vmatprep.subr.mxu0 0.0
        %1166 = vmatpush1.xpose.msra.mxu0 0.0
        %1167 = vmatprep.subr.mxu0 0.0
        %1168 = vmatpush1.xpose.msra.mxu0 0.0
        %1169 = vmatprep.subr.mxu0 0.0
        %1170 = vmatpush1.xpose.msra.mxu0 0.0
        %1171 = vmatprep.subr.mxu0 0.0
        %1172 = vmatpush1.xpose.msra.mxu0 0.0
        %1173 = vmatprep.subr.mxu0 0.0
        %1174 = vmatpush1.xpose.msra.mxu0 0.0
        %1175 = vmatprep.subr.mxu0 0.0
        %1176 = vmatpush1.xpose.msra.mxu0 0.0
        %1177 = vmatprep.subr.mxu0 0.0
        %1178 = vmatpush1.xpose.msra.mxu0 0.0
        %1179 = vmatprep.subr.mxu0 0.0
        %1180 = vmatpush1.xpose.msra.mxu0 0.0
        %1181 = vmatprep.subr.mxu0 0.0
        %1182 = vmatpush1.xpose.msra.mxu0 0.0
        %1183 = vmatprep.subr.mxu0 0.0
        %1184 = vmatpush1.xpose.msra.mxu0 0.0
        %1185 = vmatprep.subr.mxu0 0.0
        %1186 = vmatpush1.xpose.msra.mxu0 %v1153
        %1187 = vmatprep.subr.mxu0 0.0
        %1188 = vmatpush2.xpose.msra.mxu0 0.0
        %1189 = vmatprep.subr.mxu0 0.0
        %1190 = vmatpush2.xpose.msra.mxu0 0.0
        %1191 = vmatprep.subr.mxu0 0.0
        %1192 = vmatpush2.xpose.msra.mxu0 0.0
        %1193 = vmatprep.subr.mxu0 0.0
        %1194 = vmatpush2.xpose.msra.mxu0 0.0
        %1195 = vmatprep.subr.mxu0 0.0
        %1196 = vmatpush2.xpose.msra.mxu0 0.0
        %1197 = vmatprep.subr.mxu0 0.0
        %1198 = vmatpush2.xpose.msra.mxu0 0.0
        %1199 = vmatprep.subr.mxu0 0.0
        %1200 = vmatpush2.xpose.msra.mxu0 0.0
        %1201 = vmatprep.subr.mxu0 0.0
        %1202 = vmatpush2.xpose.msra.mxu0 0.0
        %1203 = vmatprep.subr.mxu0 0.0
        %1204 = vmatpush2.xpose.msra.mxu0 0.0
        %1205 = vmatprep.subr.mxu0 0.0
        %1206 = vmatpush2.xpose.msra.mxu0 0.0
        %1207 = vmatprep.subr.mxu0 0.0
        %1208 = vmatpush2.xpose.msra.mxu0 0.0
        %1209 = vmatprep.subr.mxu0 0.0
        %1210 = vmatpush2.xpose.msra.mxu0 0.0
        %1211 = vmatprep.subr.mxu0 0.0
        %1212 = vmatpush2.xpose.msra.mxu0 0.0
        %1213 = vmatprep.subr.mxu0 0.0
        %1214 = vmatpush2.xpose.msra.mxu0 0.0
        %1215 = vmatprep.subr.mxu0 0.0
        %1216 = vmatpush2.xpose.msra.mxu0 0.0
        %1217 = vmatprep.subr.mxu0 0.0
        %1218 = vmatpush2.xpose.msra.mxu0 0.0
        %1219 = vmatprep.mubr.f32.mxu0 0.0
        %1220 = vmatmul.mubr.f32.gmra.mxu0 %v1151
        %v1221 = vpop.f32.mrf.mxu0
        %v1222 = vadd.f32 0.0, %v1221
        %v1223 = vpop.f32.mrf.mxu0
        %1224 = vdwg.mxu0
        %v1225 = vsel %vm566, %v1222, -inf
        %1226 = vmax.xlane.f32.xlu0 %v1225
        %v1227 = vpop.xlane.xlu0 %1226
        %v1228 = vsub.f32 %v1222, %v1227
        %v1229 = vmul.f32 %v1228, 1.442695
        %v1230 = vpow.pop %v1229
        %v1231 = vsel %vm566, %v1230, 0.0
        %1232 = vadd.xlane.f32.xlu0 %v1231
        %v1233 = vpop.xlane.xlu0 %1232
        %v1234 = vrcp.pop %v1233
        %v1235 = vmul.f32 %v1230, %v1234
        %1236 = vrot.lane.b32.xlu0 %v488, 112
        %v1237 = vpop.permute.xlu0 %1236
        %v1240 = vsel %vm566, %v1235, 0
        %1242 = vmatprep.subr.mxu0 0.0
        %1243 = vmatpush1.msra.mxu0 0.0
        %1244 = vmatprep.subr.mxu0 0.0
        %1245 = vmatpush1.msra.mxu0 0.0
        %1246 = vmatprep.subr.mxu0 0.0
        %1247 = vmatpush1.msra.mxu0 0.0
        %1248 = vmatprep.subr.mxu0 0.0
        %1249 = vmatpush1.msra.mxu0 0.0
        %1250 = vmatprep.subr.mxu0 0.0
        %1251 = vmatpush1.msra.mxu0 0.0
        %1252 = vmatprep.subr.mxu0 0.0
        %1253 = vmatpush1.msra.mxu0 0.0
        %1254 = vmatprep.subr.mxu0 0.0
        %1255 = vmatpush1.msra.mxu0 0.0
        %1256 = vmatprep.subr.mxu0 0.0
        %1257 = vmatpush1.msra.mxu0 0.0
        %1258 = vmatprep.subr.mxu0 0.0
        %1259 = vmatpush1.msra.mxu0 0.0
        %1260 = vmatprep.subr.mxu0 0.0
        %1261 = vmatpush1.msra.mxu0 0.0
        %1262 = vmatprep.subr.mxu0 0.0
        %1263 = vmatpush1.msra.mxu0 0.0
        %1264 = vmatprep.subr.mxu0 0.0
        %1265 = vmatpush1.msra.mxu0 0.0
        %1266 = vmatprep.subr.mxu0 0.0
        %1267 = vmatpush1.msra.mxu0 0.0
        %1268 = vmatprep.subr.mxu0 0.0
        %1269 = vmatpush1.msra.mxu0 0.0
        %1270 = vmatprep.subr.mxu0 0.0
        %1271 = vmatpush1.msra.mxu0 0.0
        %1272 = vmatprep.subr.mxu0 0.0
        %1273 = vmatpush1.msra.mxu0 %v1237
        %1274 = vmatprep.subr.mxu0 0.0
        %1275 = vmatpush2.msra.mxu0 0.0
        %1276 = vmatprep.subr.mxu0 0.0
        %1277 = vmatpush2.msra.mxu0 0.0
        %1278 = vmatprep.subr.mxu0 0.0
        %1279 = vmatpush2.msra.mxu0 0.0
        %1280 = vmatprep.subr.mxu0 0.0
        %1281 = vmatpush2.msra.mxu0 0.0
        %1282 = vmatprep.subr.mxu0 0.0
        %1283 = vmatpush2.msra.mxu0 0.0
        %1284 = vmatprep.subr.mxu0 0.0
        %1285 = vmatpush2.msra.mxu0 0.0
        %1286 = vmatprep.subr.mxu0 0.0
        %1287 = vmatpush2.msra.mxu0 0.0
        %1288 = vmatprep.subr.mxu0 0.0
        %1289 = vmatpush2.msra.mxu0 0.0
        %1290 = vmatprep.subr.mxu0 0.0
        %1291 = vmatpush2.msra.mxu0 0.0
        %1292 = vmatprep.subr.mxu0 0.0
        %1293 = vmatpush2.msra.mxu0 0.0
        %1294 = vmatprep.subr.mxu0 0.0
        %1295 = vmatpush2.msra.mxu0 0.0
        %1296 = vmatprep.subr.mxu0 0.0
        %1297 = vmatpush2.msra.mxu0 0.0
        %1298 = vmatprep.subr.mxu0 0.0
        %1299 = vmatpush2.msra.mxu0 0.0
        %1300 = vmatprep.subr.mxu0 0.0
        %1301 = vmatpush2.msra.mxu0 0.0
        %1302 = vmatprep.subr.mxu0 0.0
        %1303 = vmatpush2.msra.mxu0 0.0
        %1304 = vmatprep.subr.mxu0 0.0
        %1305 = vmatpush2.msra.mxu0 0.0
        %1306 = vmatprep.mubr.f32.mxu0 0.0
        %1307 = vmatmul.mubr.f32.gmra.mxu0 %v1240
        %v1308 = vpop.f32.mrf.mxu0
        %v1309 = vadd.f32 0.0, %v1308
        %v1310 = vpop.f32.mrf.mxu0
        %1311 = vdwg.mxu0
        %1312 = vrot.lane.b32.xlu0 %v486, 108
        %v1313 = vpop.permute.xlu0 %1312
        %1314 = vrot.lane.b32.xlu0 %v487, 108
        %v1315 = vpop.permute.xlu0 %1314
        %v1316 = vsel %vm489, %v1313, 0
        %v1318 = vsel %vm489, %v1315, 0
        %1320 = vmatprep.subr.mxu0 0.0
        %1321 = vmatpush1.xpose.msra.mxu0 0.0
        %1322 = vmatprep.subr.mxu0 0.0
        %1323 = vmatpush1.xpose.msra.mxu0 0.0
        %1324 = vmatprep.subr.mxu0 0.0
        %1325 = vmatpush1.xpose.msra.mxu0 0.0
        %1326 = vmatprep.subr.mxu0 0.0
        %1327 = vmatpush1.xpose.msra.mxu0 0.0
        %1328 = vmatprep.subr.mxu0 0.0
        %1329 = vmatpush1.xpose.msra.mxu0 0.0
        %1330 = vmatprep.subr.mxu0 0.0
        %1331 = vmatpush1.xpose.msra.mxu0 0.0
        %1332 = vmatprep.subr.mxu0 0.0
        %1333 = vmatpush1.xpose.msra.mxu0 0.0
        %1334 = vmatprep.subr.mxu0 0.0
        %1335 = vmatpush1.xpose.msra.mxu0 0.0
        %1336 = vmatprep.subr.mxu0 0.0
        %1337 = vmatpush1.xpose.msra.mxu0 0.0
        %1338 = vmatprep.subr.mxu0 0.0
        %1339 = vmatpush1.xpose.msra.mxu0 0.0
        %1340 = vmatprep.subr.mxu0 0.0
        %1341 = vmatpush1.xpose.msra.mxu0 0.0
        %1342 = vmatprep.subr.mxu0 0.0
        %1343 = vmatpush1.xpose.msra.mxu0 0.0
        %1344 = vmatprep.subr.mxu0 0.0
        %1345 = vmatpush1.xpose.msra.mxu0 0.0
        %1346 = vmatprep.subr.mxu0 0.0
        %1347 = vmatpush1.xpose.msra.mxu0 0.0
        %1348 = vmatprep.subr.mxu0 0.0
        %1349 = vmatpush1.xpose.msra.mxu0 0.0
        %1350 = vmatprep.subr.mxu0 0.0
        %1351 = vmatpush1.xpose.msra.mxu0 %v1318
        %1352 = vmatprep.subr.mxu0 0.0
        %1353 = vmatpush2.xpose.msra.mxu0 0.0
        %1354 = vmatprep.subr.mxu0 0.0
        %1355 = vmatpush2.xpose.msra.mxu0 0.0
        %1356 = vmatprep.subr.mxu0 0.0
        %1357 = vmatpush2.xpose.msra.mxu0 0.0
        %1358 = vmatprep.subr.mxu0 0.0
        %1359 = vmatpush2.xpose.msra.mxu0 0.0
        %1360 = vmatprep.subr.mxu0 0.0
        %1361 = vmatpush2.xpose.msra.mxu0 0.0
        %1362 = vmatprep.subr.mxu0 0.0
        %1363 = vmatpush2.xpose.msra.mxu0 0.0
        %1364 = vmatprep.subr.mxu0 0.0
        %1365 = vmatpush2.xpose.msra.mxu0 0.0
        %1366 = vmatprep.subr.mxu0 0.0
        %1367 = vmatpush2.xpose.msra.mxu0 0.0
        %1368 = vmatprep.subr.mxu0 0.0
        %1369 = vmatpush2.xpose.msra.mxu0 0.0
        %1370 = vmatprep.subr.mxu0 0.0
        %1371 = vmatpush2.xpose.msra.mxu0 0.0
        %1372 = vmatprep.subr.mxu0 0.0
        %1373 = vmatpush2.xpose.msra.mxu0 0.0
        %1374 = vmatprep.subr.mxu0 0.0
        %1375 = vmatpush2.xpose.msra.mxu0 0.0
        %1376 = vmatprep.subr.mxu0 0.0
        %1377 = vmatpush2.xpose.msra.mxu0 0.0
        %1378 = vmatprep.subr.mxu0 0.0
        %1379 = vmatpush2.xpose.msra.mxu0 0.0
        %1380 = vmatprep.subr.mxu0 0.0
        %1381 = vmatpush2.xpose.msra.mxu0 0.0
        %1382 = vmatprep.subr.mxu0 0.0
        %1383 = vmatpush2.xpose.msra.mxu0 0.0
        %1384 = vmatprep.mubr.f32.mxu0 0.0
        %1385 = vmatmul.mubr.f32.gmra.mxu0 %v1316
        %v1386 = vpop.f32.mrf.mxu0
        %v1387 = vadd.f32 0.0, %v1386
        %v1388 = vpop.f32.mrf.mxu0
        %1389 = vdwg.mxu0
        %v1390 = vsel %vm566, %v1387, -inf
        %1391 = vmax.xlane.f32.xlu0 %v1390
        %v1392 = vpop.xlane.xlu0 %1391
        %v1393 = vsub.f32 %v1387, %v1392
        %v1394 = vmul.f32 %v1393, 1.442695
        %v1395 = vpow.pop %v1394
        %v1396 = vsel %vm566, %v1395, 0.0
        %1397 = vadd.xlane.f32.xlu0 %v1396
        %v1398 = vpop.xlane.xlu0 %1397
        %v1399 = vrcp.pop %v1398
        %v1400 = vmul.f32 %v1395, %v1399
        %1401 = vrot.lane.b32.xlu0 %v488, 108
        %v1402 = vpop.permute.xlu0 %1401
        %v1405 = vsel %vm566, %v1400, 0
        %1407 = vmatprep.subr.mxu0 0.0
        %1408 = vmatpush1.msra.mxu0 0.0
        %1409 = vmatprep.subr.mxu0 0.0
        %1410 = vmatpush1.msra.mxu0 0.0
        %1411 = vmatprep.subr.mxu0 0.0
        %1412 = vmatpush1.msra.mxu0 0.0
        %1413 = vmatprep.subr.mxu0 0.0
        %1414 = vmatpush1.msra.mxu0 0.0
        %1415 = vmatprep.subr.mxu0 0.0
        %1416 = vmatpush1.msra.mxu0 0.0
        %1417 = vmatprep.subr.mxu0 0.0
        %1418 = vmatpush1.msra.mxu0 0.0
        %1419 = vmatprep.subr.mxu0 0.0
        %1420 = vmatpush1.msra.mxu0 0.0
        %1421 = vmatprep.subr.mxu0 0.0
        %1422 = vmatpush1.msra.mxu0 0.0
        %1423 = vmatprep.subr.mxu0 0.0
        %1424 = vmatpush1.msra.mxu0 0.0
        %1425 = vmatprep.subr.mxu0 0.0
        %1426 = vmatpush1.msra.mxu0 0.0
        %1427 = vmatprep.subr.mxu0 0.0
        %1428 = vmatpush1.msra.mxu0 0.0
        %1429 = vmatprep.subr.mxu0 0.0
        %1430 = vmatpush1.msra.mxu0 0.0
        %1431 = vmatprep.subr.mxu0 0.0
        %1432 = vmatpush1.msra.mxu0 0.0
        %1433 = vmatprep.subr.mxu0 0.0
        %1434 = vmatpush1.msra.mxu0 0.0
        %1435 = vmatprep.subr.mxu0 0.0
        %1436 = vmatpush1.msra.mxu0 0.0
        %1437 = vmatprep.subr.mxu0 0.0
        %1438 = vmatpush1.msra.mxu0 %v1402
        %1439 = vmatprep.subr.mxu0 0.0
        %1440 = vmatpush2.msra.mxu0 0.0
        %1441 = vmatprep.subr.mxu0 0.0
        %1442 = vmatpush2.msra.mxu0 0.0
        %1443 = vmatprep.subr.mxu0 0.0
        %1444 = vmatpush2.msra.mxu0 0.0
        %1445 = vmatprep.subr.mxu0 0.0
        %1446 = vmatpush2.msra.mxu0 0.0
        %1447 = vmatprep.subr.mxu0 0.0
        %1448 = vmatpush2.msra.mxu0 0.0
        %1449 = vmatprep.subr.mxu0 0.0
        %1450 = vmatpush2.msra.mxu0 0.0
        %1451 = vmatprep.subr.mxu0 0.0
        %1452 = vmatpush2.msra.mxu0 0.0
        %1453 = vmatprep.subr.mxu0 0.0
        %1454 = vmatpush2.msra.mxu0 0.0
        %1455 = vmatprep.subr.mxu0 0.0
        %1456 = vmatpush2.msra.mxu0 0.0
        %1457 = vmatprep.subr.mxu0 0.0
        %1458 = vmatpush2.msra.mxu0 0.0
        %1459 = vmatprep.subr.mxu0 0.0
        %1460 = vmatpush2.msra.mxu0 0.0
        %1461 = vmatprep.subr.mxu0 0.0
        %1462 = vmatpush2.msra.mxu0 0.0
        %1463 = vmatprep.subr.mxu0 0.0
        %1464 = vmatpush2.msra.mxu0 0.0
        %1465 = vmatprep.subr.mxu0 0.0
        %1466 = vmatpush2.msra.mxu0 0.0
        %1467 = vmatprep.subr.mxu0 0.0
        %1468 = vmatpush2.msra.mxu0 0.0
        %1469 = vmatprep.subr.mxu0 0.0
        %1470 = vmatpush2.msra.mxu0 0.0
        %1471 = vmatprep.mubr.f32.mxu0 0.0
        %1472 = vmatmul.mubr.f32.gmra.mxu0 %v1405
        %v1473 = vpop.f32.mrf.mxu0
        %v1474 = vadd.f32 0.0, %v1473
        %v1475 = vpop.f32.mrf.mxu0
        %1476 = vdwg.mxu0
        %1477 = vrot.lane.b32.xlu0 %v486, 104
        %v1478 = vpop.permute.xlu0 %1477
        %1479 = vrot.lane.b32.xlu0 %v487, 104
        %v1480 = vpop.permute.xlu0 %1479
        %v1481 = vsel %vm489, %v1478, 0
        %v1483 = vsel %vm489, %v1480, 0
        %1485 = vmatprep.subr.mxu0 0.0
        %1486 = vmatpush1.xpose.msra.mxu0 0.0
        %1487 = vmatprep.subr.mxu0 0.0
        %1488 = vmatpush1.xpose.msra.mxu0 0.0
        %1489 = vmatprep.subr.mxu0 0.0
        %1490 = vmatpush1.xpose.msra.mxu0 0.0
        %1491 = vmatprep.subr.mxu0 0.0
        %1492 = vmatpush1.xpose.msra.mxu0 0.0
        %1493 = vmatprep.subr.mxu0 0.0
        %1494 = vmatpush1.xpose.msra.mxu0 0.0
        %1495 = vmatprep.subr.mxu0 0.0
        %1496 = vmatpush1.xpose.msra.mxu0 0.0
        %1497 = vmatprep.subr.mxu0 0.0
        %1498 = vmatpush1.xpose.msra.mxu0 0.0
        %1499 = vmatprep.subr.mxu0 0.0
        %1500 = vmatpush1.xpose.msra.mxu0 0.0
        %1501 = vmatprep.subr.mxu0 0.0
        %1502 = vmatpush1.xpose.msra.mxu0 0.0
        %1503 = vmatprep.subr.mxu0 0.0
        %1504 = vmatpush1.xpose.msra.mxu0 0.0
        %1505 = vmatprep.subr.mxu0 0.0
        %1506 = vmatpush1.xpose.msra.mxu0 0.0
        %1507 = vmatprep.subr.mxu0 0.0
        %1508 = vmatpush1.xpose.msra.mxu0 0.0
        %1509 = vmatprep.subr.mxu0 0.0
        %1510 = vmatpush1.xpose.msra.mxu0 0.0
        %1511 = vmatprep.subr.mxu0 0.0
        %1512 = vmatpush1.xpose.msra.mxu0 0.0
        %1513 = vmatprep.subr.mxu0 0.0
        %1514 = vmatpush1.xpose.msra.mxu0 0.0
        %1515 = vmatprep.subr.mxu0 0.0
        %1516 = vmatpush1.xpose.msra.mxu0 %v1483
        %1517 = vmatprep.subr.mxu0 0.0
        %1518 = vmatpush2.xpose.msra.mxu0 0.0
        %1519 = vmatprep.subr.mxu0 0.0
        %1520 = vmatpush2.xpose.msra.mxu0 0.0
        %1521 = vmatprep.subr.mxu0 0.0
        %1522 = vmatpush2.xpose.msra.mxu0 0.0
        %1523 = vmatprep.subr.mxu0 0.0
        %1524 = vmatpush2.xpose.msra.mxu0 0.0
        %1525 = vmatprep.subr.mxu0 0.0
        %1526 = vmatpush2.xpose.msra.mxu0 0.0
        %1527 = vmatprep.subr.mxu0 0.0
        %1528 = vmatpush2.xpose.msra.mxu0 0.0
        %1529 = vmatprep.subr.mxu0 0.0
        %1530 = vmatpush2.xpose.msra.mxu0 0.0
        %1531 = vmatprep.subr.mxu0 0.0
        %1532 = vmatpush2.xpose.msra.mxu0 0.0
        %1533 = vmatprep.subr.mxu0 0.0
        %1534 = vmatpush2.xpose.msra.mxu0 0.0
        %1535 = vmatprep.subr.mxu0 0.0
        %1536 = vmatpush2.xpose.msra.mxu0 0.0
        %1537 = vmatprep.subr.mxu0 0.0
        %1538 = vmatpush2.xpose.msra.mxu0 0.0
        %1539 = vmatprep.subr.mxu0 0.0
        %1540 = vmatpush2.xpose.msra.mxu0 0.0
        %1541 = vmatprep.subr.mxu0 0.0
        %1542 = vmatpush2.xpose.msra.mxu0 0.0
        %1543 = vmatprep.subr.mxu0 0.0
        %1544 = vmatpush2.xpose.msra.mxu0 0.0
        %1545 = vmatprep.subr.mxu0 0.0
        %1546 = vmatpush2.xpose.msra.mxu0 0.0
        %1547 = vmatprep.subr.mxu0 0.0
        %1548 = vmatpush2.xpose.msra.mxu0 0.0
        %1549 = vmatprep.mubr.f32.mxu0 0.0
        %1550 = vmatmul.mubr.f32.gmra.mxu0 %v1481
        %v1551 = vpop.f32.mrf.mxu0
        %v1552 = vadd.f32 0.0, %v1551
        %v1553 = vpop.f32.mrf.mxu0
        %1554 = vdwg.mxu0
        %v1555 = vsel %vm566, %v1552, -inf
        %1556 = vmax.xlane.f32.xlu0 %v1555
        %v1557 = vpop.xlane.xlu0 %1556
        %v1558 = vsub.f32 %v1552, %v1557
        %v1559 = vmul.f32 %v1558, 1.442695
        %v1560 = vpow.pop %v1559
        %v1561 = vsel %vm566, %v1560, 0.0
        %1562 = vadd.xlane.f32.xlu0 %v1561
        %v1563 = vpop.xlane.xlu0 %1562
        %v1564 = vrcp.pop %v1563
        %v1565 = vmul.f32 %v1560, %v1564
        %1566 = vrot.lane.b32.xlu0 %v488, 104
        %v1567 = vpop.permute.xlu0 %1566
        %v1570 = vsel %vm566, %v1565, 0
        %1572 = vmatprep.subr.mxu0 0.0
        %1573 = vmatpush1.msra.mxu0 0.0
        %1574 = vmatprep.subr.mxu0 0.0
        %1575 = vmatpush1.msra.mxu0 0.0
        %1576 = vmatprep.subr.mxu0 0.0
        %1577 = vmatpush1.msra.mxu0 0.0
        %1578 = vmatprep.subr.mxu0 0.0
        %1579 = vmatpush1.msra.mxu0 0.0
        %1580 = vmatprep.subr.mxu0 0.0
        %1581 = vmatpush1.msra.mxu0 0.0
        %1582 = vmatprep.subr.mxu0 0.0
        %1583 = vmatpush1.msra.mxu0 0.0
        %1584 = vmatprep.subr.mxu0 0.0
        %1585 = vmatpush1.msra.mxu0 0.0
        %1586 = vmatprep.subr.mxu0 0.0
        %1587 = vmatpush1.msra.mxu0 0.0
        %1588 = vmatprep.subr.mxu0 0.0
        %1589 = vmatpush1.msra.mxu0 0.0
        %1590 = vmatprep.subr.mxu0 0.0
        %1591 = vmatpush1.msra.mxu0 0.0
        %1592 = vmatprep.subr.mxu0 0.0
        %1593 = vmatpush1.msra.mxu0 0.0
        %1594 = vmatprep.subr.mxu0 0.0
        %1595 = vmatpush1.msra.mxu0 0.0
        %1596 = vmatprep.subr.mxu0 0.0
        %1597 = vmatpush1.msra.mxu0 0.0
        %1598 = vmatprep.subr.mxu0 0.0
        %1599 = vmatpush1.msra.mxu0 0.0
        %1600 = vmatprep.subr.mxu0 0.0
        %1601 = vmatpush1.msra.mxu0 0.0
        %1602 = vmatprep.subr.mxu0 0.0
        %1603 = vmatpush1.msra.mxu0 %v1567
        %1604 = vmatprep.subr.mxu0 0.0
        %1605 = vmatpush2.msra.mxu0 0.0
        %1606 = vmatprep.subr.mxu0 0.0
        %1607 = vmatpush2.msra.mxu0 0.0
        %1608 = vmatprep.subr.mxu0 0.0
        %1609 = vmatpush2.msra.mxu0 0.0
        %1610 = vmatprep.subr.mxu0 0.0
        %1611 = vmatpush2.msra.mxu0 0.0
        %1612 = vmatprep.subr.mxu0 0.0
        %1613 = vmatpush2.msra.mxu0 0.0
        %1614 = vmatprep.subr.mxu0 0.0
        %1615 = vmatpush2.msra.mxu0 0.0
        %1616 = vmatprep.subr.mxu0 0.0
        %1617 = vmatpush2.msra.mxu0 0.0
        %1618 = vmatprep.subr.mxu0 0.0
        %1619 = vmatpush2.msra.mxu0 0.0
        %1620 = vmatprep.subr.mxu0 0.0
        %1621 = vmatpush2.msra.mxu0 0.0
        %1622 = vmatprep.subr.mxu0 0.0
        %1623 = vmatpush2.msra.mxu0 0.0
        %1624 = vmatprep.subr.mxu0 0.0
        %1625 = vmatpush2.msra.mxu0 0.0
        %1626 = vmatprep.subr.mxu0 0.0
        %1627 = vmatpush2.msra.mxu0 0.0
        %1628 = vmatprep.subr.mxu0 0.0
        %1629 = vmatpush2.msra.mxu0 0.0
        %1630 = vmatprep.subr.mxu0 0.0
        %1631 = vmatpush2.msra.mxu0 0.0
        %1632 = vmatprep.subr.mxu0 0.0
        %1633 = vmatpush2.msra.mxu0 0.0
        %1634 = vmatprep.subr.mxu0 0.0
        %1635 = vmatpush2.msra.mxu0 0.0
        %1636 = vmatprep.mubr.f32.mxu0 0.0
        %1637 = vmatmul.mubr.f32.gmra.mxu0 %v1570
        %v1638 = vpop.f32.mrf.mxu0
        %v1639 = vadd.f32 0.0, %v1638
        %v1640 = vpop.f32.mrf.mxu0
        %1641 = vdwg.mxu0
        %1642 = vrot.lane.b32.xlu0 %v486, 100
        %v1643 = vpop.permute.xlu0 %1642
        %1644 = vrot.lane.b32.xlu0 %v487, 100
        %v1645 = vpop.permute.xlu0 %1644
        %v1646 = vsel %vm489, %v1643, 0
        %v1648 = vsel %vm489, %v1645, 0
        %1650 = vmatprep.subr.mxu0 0.0
        %1651 = vmatpush1.xpose.msra.mxu0 0.0
        %1652 = vmatprep.subr.mxu0 0.0
        %1653 = vmatpush1.xpose.msra.mxu0 0.0
        %1654 = vmatprep.subr.mxu0 0.0
        %1655 = vmatpush1.xpose.msra.mxu0 0.0
        %1656 = vmatprep.subr.mxu0 0.0
        %1657 = vmatpush1.xpose.msra.mxu0 0.0
        %1658 = vmatprep.subr.mxu0 0.0
        %1659 = vmatpush1.xpose.msra.mxu0 0.0
        %1660 = vmatprep.subr.mxu0 0.0
        %1661 = vmatpush1.xpose.msra.mxu0 0.0
        %1662 = vmatprep.subr.mxu0 0.0
        %1663 = vmatpush1.xpose.msra.mxu0 0.0
        %1664 = vmatprep.subr.mxu0 0.0
        %1665 = vmatpush1.xpose.msra.mxu0 0.0
        %1666 = vmatprep.subr.mxu0 0.0
        %1667 = vmatpush1.xpose.msra.mxu0 0.0
        %1668 = vmatprep.subr.mxu0 0.0
        %1669 = vmatpush1.xpose.msra.mxu0 0.0
        %1670 = vmatprep.subr.mxu0 0.0
        %1671 = vmatpush1.xpose.msra.mxu0 0.0
        %1672 = vmatprep.subr.mxu0 0.0
        %1673 = vmatpush1.xpose.msra.mxu0 0.0
        %1674 = vmatprep.subr.mxu0 0.0
        %1675 = vmatpush1.xpose.msra.mxu0 0.0
        %1676 = vmatprep.subr.mxu0 0.0
        %1677 = vmatpush1.xpose.msra.mxu0 0.0
        %1678 = vmatprep.subr.mxu0 0.0
        %1679 = vmatpush1.xpose.msra.mxu0 0.0
        %1680 = vmatprep.subr.mxu0 0.0
        %1681 = vmatpush1.xpose.msra.mxu0 %v1648
        %1682 = vmatprep.subr.mxu0 0.0
        %1683 = vmatpush2.xpose.msra.mxu0 0.0
        %1684 = vmatprep.subr.mxu0 0.0
        %1685 = vmatpush2.xpose.msra.mxu0 0.0
        %1686 = vmatprep.subr.mxu0 0.0
        %1687 = vmatpush2.xpose.msra.mxu0 0.0
        %1688 = vmatprep.subr.mxu0 0.0
        %1689 = vmatpush2.xpose.msra.mxu0 0.0
        %1690 = vmatprep.subr.mxu0 0.0
        %1691 = vmatpush2.xpose.msra.mxu0 0.0
        %1692 = vmatprep.subr.mxu0 0.0
        %1693 = vmatpush2.xpose.msra.mxu0 0.0
        %1694 = vmatprep.subr.mxu0 0.0
        %1695 = vmatpush2.xpose.msra.mxu0 0.0
        %1696 = vmatprep.subr.mxu0 0.0
        %1697 = vmatpush2.xpose.msra.mxu0 0.0
        %1698 = vmatprep.subr.mxu0 0.0
        %1699 = vmatpush2.xpose.msra.mxu0 0.0
        %1700 = vmatprep.subr.mxu0 0.0
        %1701 = vmatpush2.xpose.msra.mxu0 0.0
        %1702 = vmatprep.subr.mxu0 0.0
        %1703 = vmatpush2.xpose.msra.mxu0 0.0
        %1704 = vmatprep.subr.mxu0 0.0
        %1705 = vmatpush2.xpose.msra.mxu0 0.0
        %1706 = vmatprep.subr.mxu0 0.0
        %1707 = vmatpush2.xpose.msra.mxu0 0.0
        %1708 = vmatprep.subr.mxu0 0.0
        %1709 = vmatpush2.xpose.msra.mxu0 0.0
        %1710 = vmatprep.subr.mxu0 0.0
        %1711 = vmatpush2.xpose.msra.mxu0 0.0
        %1712 = vmatprep.subr.mxu0 0.0
        %1713 = vmatpush2.xpose.msra.mxu0 0.0
        %1714 = vmatprep.mubr.f32.mxu0 0.0
        %1715 = vmatmul.mubr.f32.gmra.mxu0 %v1646
        %v1716 = vpop.f32.mrf.mxu0
        %v1717 = vadd.f32 0.0, %v1716
        %v1718 = vpop.f32.mrf.mxu0
        %1719 = vdwg.mxu0
        %v1720 = vsel %vm566, %v1717, -inf
        %1721 = vmax.xlane.f32.xlu0 %v1720
        %v1722 = vpop.xlane.xlu0 %1721
        %v1723 = vsub.f32 %v1717, %v1722
        %v1724 = vmul.f32 %v1723, 1.442695
        %v1725 = vpow.pop %v1724
        %v1726 = vsel %vm566, %v1725, 0.0
        %1727 = vadd.xlane.f32.xlu0 %v1726
        %v1728 = vpop.xlane.xlu0 %1727
        %v1729 = vrcp.pop %v1728
        %v1730 = vmul.f32 %v1725, %v1729
        %1731 = vrot.lane.b32.xlu0 %v488, 100
        %v1732 = vpop.permute.xlu0 %1731
        %v1735 = vsel %vm566, %v1730, 0
        %1737 = vmatprep.subr.mxu0 0.0
        %1738 = vmatpush1.msra.mxu0 0.0
        %1739 = vmatprep.subr.mxu0 0.0
        %1740 = vmatpush1.msra.mxu0 0.0
        %1741 = vmatprep.subr.mxu0 0.0
        %1742 = vmatpush1.msra.mxu0 0.0
        %1743 = vmatprep.subr.mxu0 0.0
        %1744 = vmatpush1.msra.mxu0 0.0
        %1745 = vmatprep.subr.mxu0 0.0
        %1746 = vmatpush1.msra.mxu0 0.0
        %1747 = vmatprep.subr.mxu0 0.0
        %1748 = vmatpush1.msra.mxu0 0.0
        %1749 = vmatprep.subr.mxu0 0.0
        %1750 = vmatpush1.msra.mxu0 0.0
        %1751 = vmatprep.subr.mxu0 0.0
        %1752 = vmatpush1.msra.mxu0 0.0
        %1753 = vmatprep.subr.mxu0 0.0
        %1754 = vmatpush1.msra.mxu0 0.0
        %1755 = vmatprep.subr.mxu0 0.0
        %1756 = vmatpush1.msra.mxu0 0.0
        %1757 = vmatprep.subr.mxu0 0.0
        %1758 = vmatpush1.msra.mxu0 0.0
        %1759 = vmatprep.subr.mxu0 0.0
        %1760 = vmatpush1.msra.mxu0 0.0
        %1761 = vmatprep.subr.mxu0 0.0
        %1762 = vmatpush1.msra.mxu0 0.0
        %1763 = vmatprep.subr.mxu0 0.0
        %1764 = vmatpush1.msra.mxu0 0.0
        %1765 = vmatprep.subr.mxu0 0.0
        %1766 = vmatpush1.msra.mxu0 0.0
        %1767 = vmatprep.subr.mxu0 0.0
        %1768 = vmatpush1.msra.mxu0 %v1732
        %1769 = vmatprep.subr.mxu0 0.0
        %1770 = vmatpush2.msra.mxu0 0.0
        %1771 = vmatprep.subr.mxu0 0.0
        %1772 = vmatpush2.msra.mxu0 0.0
        %1773 = vmatprep.subr.mxu0 0.0
        %1774 = vmatpush2.msra.mxu0 0.0
        %1775 = vmatprep.subr.mxu0 0.0
        %1776 = vmatpush2.msra.mxu0 0.0
        %1777 = vmatprep.subr.mxu0 0.0
        %1778 = vmatpush2.msra.mxu0 0.0
        %1779 = vmatprep.subr.mxu0 0.0
        %1780 = vmatpush2.msra.mxu0 0.0
        %1781 = vmatprep.subr.mxu0 0.0
        %1782 = vmatpush2.msra.mxu0 0.0
        %1783 = vmatprep.subr.mxu0 0.0
        %1784 = vmatpush2.msra.mxu0 0.0
        %1785 = vmatprep.subr.mxu0 0.0
        %1786 = vmatpush2.msra.mxu0 0.0
        %1787 = vmatprep.subr.mxu0 0.0
        %1788 = vmatpush2.msra.mxu0 0.0
        %1789 = vmatprep.subr.mxu0 0.0
        %1790 = vmatpush2.msra.mxu0 0.0
        %1791 = vmatprep.subr.mxu0 0.0
        %1792 = vmatpush2.msra.mxu0 0.0
        %1793 = vmatprep.subr.mxu0 0.0
        %1794 = vmatpush2.msra.mxu0 0.0
        %1795 = vmatprep.subr.mxu0 0.0
        %1796 = vmatpush2.msra.mxu0 0.0
        %1797 = vmatprep.subr.mxu0 0.0
        %1798 = vmatpush2.msra.mxu0 0.0
        %1799 = vmatprep.subr.mxu0 0.0
        %1800 = vmatpush2.msra.mxu0 0.0
        %1801 = vmatprep.mubr.f32.mxu0 0.0
        %1802 = vmatmul.mubr.f32.gmra.mxu0 %v1735
        %v1803 = vpop.f32.mrf.mxu0
        %v1804 = vadd.f32 0.0, %v1803
        %v1805 = vpop.f32.mrf.mxu0
        %1806 = vdwg.mxu0
        %1808 = vrot.lane.b32.xlu0 %v814, 4
        %v1809 = vpop.permute.xlu0 %1808
        %1812 = vrot.lane.b32.xlu0 %v979, 8
        %v1813 = vpop.permute.xlu0 %1812
        %1816 = vrot.lane.b32.xlu0 %v1144, 12
        %v1817 = vpop.permute.xlu0 %1816
        %1820 = vrot.lane.b32.xlu0 %v1309, 16
        %v1821 = vpop.permute.xlu0 %1820
        %1824 = vrot.lane.b32.xlu0 %v1474, 20
        %v1825 = vpop.permute.xlu0 %1824
        %1828 = vrot.lane.b32.xlu0 %v1639, 24
        %v1829 = vpop.permute.xlu0 %1828
        %1832 = vrot.lane.b32.xlu0 %v1804, 28
        %v1833 = vpop.permute.xlu0 %1832
        %v1835 = vsel %vm489, %v648, %v1809
        %v1836 = vsel %vm566, %v1835, %v1813
        %vm1837 = vcmask 97280
        %v1838 = vsel %vm1837, %v1836, %v1817
        %vm1839 = vcmask 130048
        %v1840 = vsel %vm1839, %v1838, %v1821
        %vm1841 = vcmask 162816
        %v1842 = vsel %vm1841, %v1840, %v1825
        %vm1843 = vcmask 195584
        %v1844 = vsel %vm1843, %v1842, %v1829
        %vm1845 = vcmask 228352
        %v1846 = vsel %vm1845, %v1844, %v1833
        %1847 = vst.msk [vmem:[%s313] sm:$0xff] %vm412, %v1846
        %s1848 = sand.u32 %s158, 1
        %s1849 = scalar_lea.sflag [#allocation6], %s1848
        %s1850 = sand.u32 %s158, 1
        %s1851 = smul.addr %s1850, 8
        %s1852 = scalar_lea.vmem [#allocation12], %s1851
        // Predicated region
        $region57: #{tpu_custom_call.1} parent=35 // pred_check
          %p1853 = pneg %p168
        $region58: #{tpu_custom_call.1} parent=35 // pred_check_branch
          %1855 = sbr.rel (%p1853) target = $region60
        $region59: #{tpu_custom_call.1} parent=35 // pred_region
          %s1856 = smul.u32 %s31, 2
          %s1857 = sadd.s32 %s1856, %s32
          %s1859 = ssub.s32 128, 128
          %1860 = vsyncadd %s1849, %s1859
          %s1861 = smul.addr %s30, 2
          %s1862 = sadd.s32 %s1857, %s1861
          %s1863 = smul.addr %s1862, 128
          %s1864 = scalar_lea.hbm %s4, %s1863
          %s1866 = sshll.u32 %s1852, 4
          %s1867 = int_to_ptr.vmem [resolvable:$true] %s1866
          %1869 = dma.vmem_to_hbm [thread:$0]  %s1867, 128, %s1864, %s1849
        $region60: #{tpu_custom_call.1} parent=35 // pred_fallthru
          _
      $region36: #{tpu_custom_call.1} parent=5 // pred_fallthru
        _
      %p1870 = scmp.le.s32.totalorder 2, %s20
      // Predicated region
      $region61: #{tpu_custom_call.1} parent=5 // pred_check
        %p1871 = pneg %p1870
      $region62: #{tpu_custom_call.1} parent=5 // pred_check_branch
        %1873 = sbr.rel (%p1871) target = $region64
      $region63: #{tpu_custom_call.1} parent=5 // pred_region
        %s1874 = ssub.s32 %s20, 2
        // Predicated region
        $region65: #{tpu_custom_call.1} parent=63 // pred_check
          %p1875 = pneg %p174
        $region66: #{tpu_custom_call.1} parent=63 // pred_check_branch
          %1877 = sbr.rel (%p1875) target = $region68
        $region67: #{tpu_custom_call.1} parent=63 // pred_region
          %s1878 = sand.u32 %s159, 1
          %s1879 = scalar_lea.sflag [#allocation6], %s1878
          %s1880 = sand.u32 %s159, 1
          %s1881 = smul.addr %s1880, 8
          %s1882 = scalar_lea.vmem [#allocation12], %s1881
          %1883 = dma.done %s1879, 128
        $region68: #{tpu_custom_call.1} parent=63 // pred_fallthru
          _
      $region64: #{tpu_custom_call.1} parent=5 // pred_fallthru
        _
    $region6: #{tpu_custom_call.1} parent=1 // loop_footer
      %s24 = sadd.s32 1, %s20
    $region7: #{tpu_custom_call.1} parent=1 // loop_footer_branch
      %19 = sbr.rel target = $region3
    $region8: #{tpu_custom_call.1} parent=1 // loop_exit
      _
    %1884 = vsyncpa [#allocation5], 1
    %s1885 = scalar_lea.sflag [#allocation5], 1
    %1886 = vsyncpa %s1885, 1
    %1887 = vsyncpa [#allocation8], 1
    %s1888 = scalar_lea.sflag [#allocation8], 1
    %1889 = vsyncpa %s1888, 1
    %1890 = vsyncpa [#allocation11], 1
    %1891 = vsyncpa [#allocation6], 1
    %s1892 = scalar_lea.sflag [#allocation6], 1
    %1893 = vsyncpa %s1892, 1

</llo_original>
